<compile_context>
chip_gen: v7x
topology: tpu7x:2x2x1
jax: 0.10.0
libtpu: 0.0.40
codegen_flags: <defaults>
</compile_context>

<pallas_src>
import functools

import jax
import jax.numpy as jnp
from jax.experimental import pallas as pl
from jax.experimental.pallas import tpu as pltpu

IN_DIM = 1024
H1_DIM = 512
H2_DIM = 64
OUT_DIM = 15

H2_PAD = 128                           # fc2 output padded to a full lane width
OUT_PAD = 128                          # fc3 output padded to a full lane width
B_PACK = H1_DIM + H2_PAD + OUT_PAD     # 768: lane-concatenated bias slab

FLOPS_PER_ROW = 2 * (IN_DIM * H1_DIM + H1_DIM * H2_PAD + H2_PAD * OUT_PAD)
WEIGHT_BYTES = ((IN_DIM * H1_DIM + (H1_DIM + H2_PAD) * OUT_PAD) * 2   # bf16 w1 + w23
                + B_PACK * 4)                                          # f32 biases


# ---------------------------------------------------------------------------
# Pallas kernel: fused 3-layer MLP (fc1 -> ReLU -> fc2 -> ReLU -> fc3)
# ---------------------------------------------------------------------------
def _fused_mlp_kernel(x_ref, w1_ref, w23_ref, b_ref, o_ref):
    # Static slices of the packed parameter slabs (zero runtime cost).
    b1 = b_ref[:, :H1_DIM]                        # (1, 512) f32
    b2 = b_ref[:, H1_DIM:H1_DIM + H2_PAD]         # (1, 128) f32 (pad lanes == 0)
    b3 = b_ref[:, H1_DIM + H2_PAD:]               # (1, 128) f32 (pad lanes == 0)

    x = x_ref[...].astype(jnp.bfloat16)           # (M, 1024)

    # fc1: (M,1024) @ (1024,512) -> f32 accumulation on the MXU.
    h = jnp.dot(x, w1_ref[...], preferred_element_type=jnp.float32)
    h = jnp.maximum(h + b1, 0.0)

    # fc2: (M,512) @ (512,128pad)
    h = jnp.dot(h.astype(jnp.bfloat16), w23_ref[:H1_DIM, :],
                preferred_element_type=jnp.float32)
    h = jnp.maximum(h + b2, 0.0)

    # fc3: (M,128pad) @ (128pad,128pad); no activation.
    h = jnp.dot(h.astype(jnp.bfloat16), w23_ref[H1_DIM:, :],
                preferred_element_type=jnp.float32)
    o_ref[...] = h + b3


# ---------------------------------------------------------------------------
# Parameters
# ---------------------------------------------------------------------------
def init_params(key):
    """Torch-layout (out_features, in_features) f32 parameters."""
    shapes = [(H1_DIM, IN_DIM), (H2_DIM, H1_DIM), (OUT_DIM, H2_DIM)]
    params = {}
    keys = jax.random.split(key, 2 * len(shapes))
    for li, shp in enumerate(shapes):
        params[f"fc{li}_w"] = 0.05 * jax.random.normal(keys[2 * li], shp,
                                                       jnp.float32)
        params[f"fc{li}_b"] = 0.05 * jax.random.normal(keys[2 * li + 1],
                                                       (shp[0],), jnp.float32)
    return params


def pack_params(params):
    """One-time layout/dtype transform into 3 kernel slabs.

    INVARIANT: padded lanes of w2/b2 and padded rows of w3 are exact zeros,
    so padded fc2 columns are exactly 0 after ReLU and contribute 0 to fc3.
    """
    w1 = params["fc0_w"].T.astype(jnp.bfloat16)                       # (1024, 512)

    w2 = jnp.zeros((H1_DIM, H2_PAD), jnp.bfloat16)
    w2 = w2.at[:, :H2_DIM].set(params["fc1_w"].T.astype(jnp.bfloat16))
    w3 = jnp.zeros((H2_PAD, OUT_PAD), jnp.bfloat16)
    w3 = w3.at[:H2_DIM, :OUT_DIM].set(params["fc2_w"].T.astype(jnp.bfloat16))
    w23 = jnp.concatenate([w2, w3], axis=0)                           # (640, 128)

    b = jnp.zeros((1, B_PACK), jnp.float32)
    b = b.at[0, :H1_DIM].set(params["fc0_b"])
    b = b.at[0, H1_DIM:H1_DIM + H2_DIM].set(params["fc1_b"])
    b = b.at[0, H1_DIM + H2_PAD:H1_DIM + H2_PAD + OUT_DIM].set(params["fc2_b"])
    return {"w1": w1, "w23": w23, "b": b}


# ---------------------------------------------------------------------------
# Forward passes
# ---------------------------------------------------------------------------
@jax.jit
def linear_evo_actor_forward(x, kparams):
    """Spec-faithful forward: single observation -> (1, 15) f32."""
    # torch: x = torch.tensor(x, dtype=torch.float32).view(1, -1)
    x = jnp.asarray(x, jnp.float32).reshape(1, -1)
    assert x.shape[1] == IN_DIM, x.shape
    vmem = pl.BlockSpec(memory_space=pltpu.MemorySpace.VMEM)
    out = pl.pallas_call(
        _fused_mlp_kernel,
        out_shape=jax.ShapeDtypeStruct((1, OUT_PAD), jnp.float32),
        in_specs=[vmem] * 4,
        out_specs=vmem,
        cost_estimate=pl.CostEstimate(
            flops=FLOPS_PER_ROW, transcendentals=0,
            bytes_accessed=WEIGHT_BYTES + IN_DIM * 4 + OUT_PAD * 4),
    )(x, kparams["w1"], kparams["w23"], kparams["b"])
    return out[:, :OUT_DIM]


@functools.partial(jax.jit, static_argnames=("tm",))
def linear_evo_actor_forward_batched(xs, kparams, tm=128):
    """Population / rollout evaluation: xs (B, 1024) -> (B, 15).

    Grid over M; weight/bias index_maps are constant so parameters are DMA'd
    once and stay VMEM-resident across grid steps.  The M axis is marked
    "parallel" so v7x megacore splits the batch across its two TensorCores.
    """
    xs = jnp.asarray(xs, jnp.float32)
    B = xs.shape[0]
    assert xs.shape[1] == IN_DIM, xs.shape

    tm_eff = min(tm, -(-B // 8) * 8)        # round B up to a sublane multiple, cap at tm
    mp = -(-B // tm_eff) * tm_eff           # padded batch (multiple of tm_eff)
    xs_bf16 = xs.astype(jnp.bfloat16)
    if mp != B:
        xs_bf16 = jnp.pad(xs_bf16, ((0, mp - B), (0, 0)))

    out = pl.pallas_call(
        _fused_mlp_kernel,
        out_shape=jax.ShapeDtypeStruct((mp, OUT_PAD), jnp.float32),
        grid=(mp // tm_eff,),
        in_specs=[
            pl.BlockSpec((tm_eff, IN_DIM), lambda i: (i, 0)),
            pl.BlockSpec((IN_DIM, H1_DIM), lambda i: (0, 0)),          # constant: resident
            pl.BlockSpec((H1_DIM + H2_PAD, OUT_PAD), lambda i: (0, 0)),
            pl.BlockSpec((1, B_PACK), lambda i: (0, 0)),
        ],
        out_specs=pl.BlockSpec((tm_eff, OUT_PAD), lambda i: (i, 0)),
        compiler_params=pltpu.CompilerParams(
            dimension_semantics=("parallel",)),
        cost_estimate=pl.CostEstimate(
            flops=mp * FLOPS_PER_ROW, transcendentals=0,
            bytes_accessed=WEIGHT_BYTES + mp * IN_DIM * 2 + mp * OUT_PAD * 4),
    )(xs_bf16, kparams["w1"], kparams["w23"], kparams["b"])
    return out[:B, :OUT_DIM]


# pure-JAX f32 reference for sanity checks
def _reference_forward(x, params):
    x = jnp.asarray(x, jnp.float32).reshape(1, -1)
    h = jnp.maximum(x @ params["fc0_w"].T + params["fc0_b"], 0.0)
    h = jnp.maximum(h @ params["fc1_w"].T + params["fc1_b"], 0.0)
    return h @ params["fc2_w"].T + params["fc2_b"]


# ---------------------------------------------------------------------------
if __name__ == "__main__":
    key = jax.random.PRNGKey(0)
    pkey, xkey, bkey = jax.random.split(key, 3)
    params = init_params(pkey)
    kparams = pack_params(params)   # one-time layout / dtype transform

    # --- single-observation (spec-faithful, M=1) path -----------------------
    x = jax.random.uniform(xkey, (IN_DIM,), jnp.float32)
    out = jax.block_until_ready(linear_evo_actor_forward(x, kparams))
    assert out.shape == (1, OUT_DIM), out.shape
    ref = _reference_forward(x, params)
    assert jnp.allclose(out, ref, atol=5e-2, rtol=5e-2), float(
        jnp.max(jnp.abs(out - ref)))

    # --- batched population / rollout path (grid over M) --------------------
    xs = jax.random.uniform(bkey, (250, IN_DIM), jnp.float32)  # pads to 256 -> grid=(2,)
    outs = jax.block_until_ready(linear_evo_actor_forward_batched(xs, kparams))
    assert outs.shape == (250, OUT_DIM), outs.shape
    refs = jax.vmap(lambda xi: _reference_forward(xi, params)[0])(xs)
    assert jnp.allclose(outs, refs, atol=5e-2, rtol=5e-2), float(
        jnp.max(jnp.abs(outs - refs)))

    print("KERNEL_OK")
</pallas_src>

<mosaic_0001>
module attributes {stable_mosaic.version = 11 : i64} {
  func.func @_fused_mlp_kernel(%arg0: memref<1x1024xf32, #tpu.memory_space<vmem>>, %arg1: memref<1024x512xbf16, #tpu.memory_space<vmem>>, %arg2: memref<640x128xbf16, #tpu.memory_space<vmem>>, %arg3: memref<1x768xf32, #tpu.memory_space<vmem>>, %arg4: memref<1x128xf32, #tpu.memory_space<vmem>>) attributes {dimension_semantics = [], scalar_prefetch = 0 : i64, scratch_operands = 0 : i64, tpu.core_type = #tpu.core_type<tc>} {
    %c0 = arith.constant 0 : index
    %c0_0 = arith.constant 0 : index
    %0 = vector.load %arg3[%c0, %c0_0] : memref<1x768xf32, #tpu.memory_space<vmem>>, vector<1x512xf32>
    %c0_1 = arith.constant 0 : index
    %c512 = arith.constant 512 : index
    %1 = vector.load %arg3[%c0_1, %c512] : memref<1x768xf32, #tpu.memory_space<vmem>>, vector<1x128xf32>
    %c0_2 = arith.constant 0 : index
    %c640 = arith.constant 640 : index
    %2 = vector.load %arg3[%c0_2, %c640] : memref<1x768xf32, #tpu.memory_space<vmem>>, vector<1x128xf32>
    %c0_3 = arith.constant 0 : index
    %c0_4 = arith.constant 0 : index
    %3 = vector.load %arg0[%c0_3, %c0_4] : memref<1x1024xf32, #tpu.memory_space<vmem>>, vector<1x1024xf32>
    %4 = arith.truncf %3 : vector<1x1024xf32> to vector<1x1024xbf16>
    %c0_5 = arith.constant 0 : index
    %c0_6 = arith.constant 0 : index
    %5 = vector.load %arg1[%c0_5, %c0_6] : memref<1024x512xbf16, #tpu.memory_space<vmem>>, vector<1024x512xbf16>
    %cst = arith.constant dense<0.000000e+00> : vector<1x512xf32>
    %6 = tpu.matmul %4, %5, %cst {dimension_numbers = #tpu.dot_dimension_numbers<[1], [0], [0], [1], [0, 0, 1, 1], [], []>} : vector<1x1024xbf16>, vector<1024x512xbf16>, vector<1x512xf32> -> vector<1x512xf32>
    %7 = arith.addf %6, %0 : vector<1x512xf32>
    %cst_7 = arith.constant 0.000000e+00 : f32
    %8 = vector.broadcast %cst_7 : f32 to vector<1x512xf32>
    %9 = arith.maximumf %7, %8 : vector<1x512xf32>
    %10 = arith.truncf %9 : vector<1x512xf32> to vector<1x512xbf16>
    %c0_8 = arith.constant 0 : index
    %c0_9 = arith.constant 0 : index
    %11 = vector.load %arg2[%c0_8, %c0_9] : memref<640x128xbf16, #tpu.memory_space<vmem>>, vector<512x128xbf16>
    %cst_10 = arith.constant dense<0.000000e+00> : vector<1x128xf32>
    %12 = tpu.matmul %10, %11, %cst_10 {dimension_numbers = #tpu.dot_dimension_numbers<[1], [0], [0], [1], [0, 0, 1, 1], [], []>} : vector<1x512xbf16>, vector<512x128xbf16>, vector<1x128xf32> -> vector<1x128xf32>
    %13 = arith.addf %12, %1 : vector<1x128xf32>
    %cst_11 = arith.constant 0.000000e+00 : f32
    %14 = vector.broadcast %cst_11 : f32 to vector<1x128xf32>
    %15 = arith.maximumf %13, %14 : vector<1x128xf32>
    %16 = arith.truncf %15 : vector<1x128xf32> to vector<1x128xbf16>
    %c512_12 = arith.constant 512 : index
    %c0_13 = arith.constant 0 : index
    %17 = vector.load %arg2[%c512_12, %c0_13] : memref<640x128xbf16, #tpu.memory_space<vmem>>, vector<128x128xbf16>
    %cst_14 = arith.constant dense<0.000000e+00> : vector<1x128xf32>
    %18 = tpu.matmul %16, %17, %cst_14 {dimension_numbers = #tpu.dot_dimension_numbers<[1], [0], [0], [1], [0, 0, 1, 1], [], []>} : vector<1x128xbf16>, vector<128x128xbf16>, vector<1x128xf32> -> vector<1x128xf32>
    %19 = arith.addf %18, %2 : vector<1x128xf32>
    %c0_15 = arith.constant 0 : index
    %c0_16 = arith.constant 0 : index
    %20 = vector.load %arg4[%c0_15, %c0_16] : memref<1x128xf32, #tpu.memory_space<vmem>>, vector<1x128xf32>
    tpu.vector_store %arg4[%c0_15, %c0_16], %19 {strides = array<i32>} : memref<1x128xf32, #tpu.memory_space<vmem>>, vector<1x128xf32>,
    return
  }
}

</mosaic_0001>

<llo_original>
// kernel: linear_evo_actor_forward.1
$region0: #{linear_evo_actor_forward.1}
  #allocation0 [shape = 'u32[]', space=smem, size = 0x4, offset = 0x4, fixed_abs, tag = 'smem constant byte address 0x4 - core index']
  #allocation1 [shape = 'u32[144,128]{1,0:T(1,128)}', space=vmem, size = 0x12000, scoped, tag = 'internal scratch']
  %s0 = inlined_call_operand.hbm [shape: f32[1,1024], index: 0, kind: input, shape index: {}]
  %s1 = inlined_call_operand.hbm [shape: bf16[1024,512], index: 1, kind: input, shape index: {}]
  %s2 = inlined_call_operand.hbm [shape: bf16[640,128], index: 2, kind: input, shape index: {}]
  %s3 = inlined_call_operand.vmem [shape: f32[1,768], index: 3, kind: input, shape index: {}]
  %s4 = inlined_call_operand.hbm [shape: f32[1,128], index: 4, kind: output, shape index: {}]
  %s5 = sld [smem:[#allocation0]]
  $region38: #{linear_evo_actor_forward.1} parent=0
    _
  %s7 = ssub.s32 1, %s5
  %s8 = scalar_select 0, %s7, %s5
  $region1: #{linear_evo_actor_forward.1} parent=0
    #allocation2 [shape = 'u8[4096]{0}', space=vmem, size = 0x1000, scoped, tag = 'input window, operand 0, single buffered']
    #allocation3 [shape = 's32[1]{0}', space=sflag, size = 0x4, scoped, tag = 'scoped memory for linear_evo_actor_forward.1']
    #allocation4 [shape = 's32[1]{0}', space=sflag, size = 0x4, scoped, tag = 'scoped memory for linear_evo_actor_forward.1']
    #allocation5 [shape = 'u8[1048576]{0}', space=vmem, size = 0x100000, scoped, tag = 'input window, operand 1, single buffered']
    #allocation6 [shape = 's32[1]{0}', space=sflag, size = 0x4, scoped, tag = 'scoped memory for linear_evo_actor_forward.1']
    #allocation7 [shape = 'u8[163840]{0}', space=vmem, size = 0x28000, scoped, tag = 'input window, operand 2, single buffered']
    #allocation8 [shape = 'u8[512]{0}', space=vmem, size = 0x400, scoped, tag = 'output window, operand 0, single buffered']
    %9 = vsyncpa [#allocation3], 0
    %10 = vsyncpa [#allocation6], 0
    %11 = vsyncpa [#allocation4], 0
    // Predicated region
    $region2: #{linear_evo_actor_forward.1} parent=1 // pred_check
      _
    $region3: #{linear_evo_actor_forward.1} parent=1 // pred_check_branch
      %13 = sbr.rel (0) target = $region5
    $region4: #{linear_evo_actor_forward.1} parent=1 // pred_region
      %s15 = ssub.s32 128, 128
      %16 = vsyncadd [#allocation3], %s15
      %s18 = sshll.u32 [#allocation2], 4
      %s19 = int_to_ptr.vmem [resolvable:$true] %s18
      %21 = dma.hbm_to_vmem [thread:$0]  %s0, 128, %s19, [#allocation3]
    $region5: #{linear_evo_actor_forward.1} parent=1 // pred_fallthru
      _
    // Predicated region
    $region6: #{linear_evo_actor_forward.1} parent=1 // pred_check
      _
    $region7: #{linear_evo_actor_forward.1} parent=1 // pred_check_branch
      %23 = sbr.rel (0) target = $region9
    $region8: #{linear_evo_actor_forward.1} parent=1 // pred_region
      %s25 = ssub.s32 32768, 32768
      %26 = vsyncadd [#allocation6], %s25
      %s27 = sshll.u32 [#allocation5], 4
      %s28 = int_to_ptr.vmem [resolvable:$true] %s27
      %33 = dma.hbm_to_vmem [thread:$0]  %s1, 32768, %s28, [#allocation6], 256, 256, 16
    $region9: #{linear_evo_actor_forward.1} parent=1 // pred_fallthru
      _
    // Predicated region
    $region10: #{linear_evo_actor_forward.1} parent=1 // pred_check
      _
    $region11: #{linear_evo_actor_forward.1} parent=1 // pred_check_branch
      %35 = sbr.rel (0) target = $region13
    $region12: #{linear_evo_actor_forward.1} parent=1 // pred_region
      %s37 = ssub.s32 5120, 5120
      %38 = vsyncadd [#allocation6], %s37
      %s39 = sshll.u32 [#allocation7], 4
      %s40 = int_to_ptr.vmem [resolvable:$true] %s39
      %45 = dma.hbm_to_vmem [thread:$0]  %s2, 5120, %s40, [#allocation6], 64, 64, 4
    $region13: #{linear_evo_actor_forward.1} parent=1 // pred_fallthru
      _
    // Predicated region
    $region14: #{linear_evo_actor_forward.1} parent=1 // pred_check
      _
    $region15: #{linear_evo_actor_forward.1} parent=1 // pred_check_branch
      %47 = sbr.rel (0) target = $region17
    $region16: #{linear_evo_actor_forward.1} parent=1 // pred_region
      _
    $region17: #{linear_evo_actor_forward.1} parent=1 // pred_fallthru
      _
    // Predicated region
    $region18: #{linear_evo_actor_forward.1} parent=1 // pred_check
      _
    $region19: #{linear_evo_actor_forward.1} parent=1 // pred_check_branch
      %49 = sbr.rel (0) target = $region21
    $region20: #{linear_evo_actor_forward.1} parent=1 // pred_region
      %50 = dma.done [#allocation3], 128
    $region21: #{linear_evo_actor_forward.1} parent=1 // pred_fallthru
      _
    // Predicated region
    $region22: #{linear_evo_actor_forward.1} parent=1 // pred_check
      _
    $region23: #{linear_evo_actor_forward.1} parent=1 // pred_check_branch
      %52 = sbr.rel (0) target = $region25
    $region24: #{linear_evo_actor_forward.1} parent=1 // pred_region
      %53 = dma.done [#allocation6], 32768
    $region25: #{linear_evo_actor_forward.1} parent=1 // pred_fallthru
      _
    // Predicated region
    $region26: #{linear_evo_actor_forward.1} parent=1 // pred_check
      _
    $region27: #{linear_evo_actor_forward.1} parent=1 // pred_check_branch
      %55 = sbr.rel (0) target = $region29
    $region28: #{linear_evo_actor_forward.1} parent=1 // pred_region
      %56 = dma.done [#allocation6], 5120
    $region29: #{linear_evo_actor_forward.1} parent=1 // pred_fallthru
      _
    %v58 = vld [vmem:[%s3] sm:$0xf]
    %v59 = vld [vmem:[%s3 + $0x4] sm:$0x1]
    %v60 = vld [vmem:[%s3 + $0x5] sm:$0x1]
    %v61 = vld [vmem:[#allocation2] sm:$0xff]
    %v63 = vlaneseq
    %v64 = vshrl.u32 %v63, 7
    %v65 = vsub.s32 0, %v64
    %v66 = vrot.slane %v61, %v65
    %v67 = vlaneseq
    %v68 = vshrl.u32 %v67, 7
    %v69 = vsub.s32 1, %v68
    %v70 = vrot.slane %v61, %v69
    %v71 = vlaneseq
    %v72 = vshrl.u32 %v71, 7
    %v73 = vsub.s32 2, %v72
    %v74 = vrot.slane %v61, %v73
    %v75 = vlaneseq
    %v76 = vshrl.u32 %v75, 7
    %v77 = vsub.s32 3, %v76
    %v78 = vrot.slane %v61, %v77
    %v79 = vlaneseq
    %v80 = vshrl.u32 %v79, 7
    %v81 = vsub.s32 4, %v80
    %v82 = vrot.slane %v61, %v81
    %v83 = vlaneseq
    %v84 = vshrl.u32 %v83, 7
    %v85 = vsub.s32 5, %v84
    %v86 = vrot.slane %v61, %v85
    %v87 = vlaneseq
    %v88 = vshrl.u32 %v87, 7
    %v89 = vsub.s32 6, %v88
    %v90 = vrot.slane %v61, %v89
    %v91 = vlaneseq
    %v92 = vshrl.u32 %v91, 7
    %v93 = vsub.s32 7, %v92
    %v94 = vrot.slane %v61, %v93
    %v103 = vpack.c.bf16 %v66, %v66
    %v104 = vpack.c.bf16 %v70, %v70
    %v105 = vpack.c.bf16 %v74, %v74
    %v106 = vpack.c.bf16 %v78, %v78
    %v107 = vpack.c.bf16 %v82, %v82
    %v108 = vpack.c.bf16 %v86, %v86
    %v109 = vpack.c.bf16 %v90, %v90
    %v110 = vpack.c.bf16 %v94, %v94
    %v111 = vld [vmem:[#allocation5] sm:$0xff]
    %v112 = vld [vmem:[#allocation5 + $0x8] sm:$0xff]
    %v113 = vld [vmem:[#allocation5 + $0x10] sm:$0xff]
    %v114 = vld [vmem:[#allocation5 + $0x18] sm:$0xff]
    %v115 = vld [vmem:[#allocation5 + $0x20] sm:$0xff]
    %v116 = vld [vmem:[#allocation5 + $0x28] sm:$0xff]
    %v117 = vld [vmem:[#allocation5 + $0x30] sm:$0xff]
    %v118 = vld [vmem:[#allocation5 + $0x38] sm:$0xff]
    %v119 = vld [vmem:[#allocation5 + $0x40] sm:$0xff]
    %v120 = vld [vmem:[#allocation5 + $0x48] sm:$0xff]
    %v121 = vld [vmem:[#allocation5 + $0x50] sm:$0xff]
    %v122 = vld [vmem:[#allocation5 + $0x58] sm:$0xff]
    %v123 = vld [vmem:[#allocation5 + $0x60] sm:$0xff]
    %v124 = vld [vmem:[#allocation5 + $0x68] sm:$0xff]
    %v125 = vld [vmem:[#allocation5 + $0x70] sm:$0xff]
    %v126 = vld [vmem:[#allocation5 + $0x78] sm:$0xff]
    %v127 = vld [vmem:[#allocation5 + $0x80] sm:$0xff]
    %v128 = vld [vmem:[#allocation5 + $0x88] sm:$0xff]
    %v129 = vld [vmem:[#allocation5 + $0x90] sm:$0xff]
    %v130 = vld [vmem:[#allocation5 + $0x98] sm:$0xff]
    %v131 = vld [vmem:[#allocation5 + $0xa0] sm:$0xff]
    %v132 = vld [vmem:[#allocation5 + $0xa8] sm:$0xff]
    %v133 = vld [vmem:[#allocation5 + $0xb0] sm:$0xff]
    %v134 = vld [vmem:[#allocation5 + $0xb8] sm:$0xff]
    %v135 = vld [vmem:[#allocation5 + $0xc0] sm:$0xff]
    %v136 = vld [vmem:[#allocation5 + $0xc8] sm:$0xff]
    %v137 = vld [vmem:[#allocation5 + $0xd0] sm:$0xff]
    %v138 = vld [vmem:[#allocation5 + $0xd8] sm:$0xff]
    %v139 = vld [vmem:[#allocation5 + $0xe0] sm:$0xff]
    %v140 = vld [vmem:[#allocation5 + $0xe8] sm:$0xff]
    %v141 = vld [vmem:[#allocation5 + $0xf0] sm:$0xff]
    %v142 = vld [vmem:[#allocation5 + $0xf8] sm:$0xff]
    %v143 = vld [vmem:[#allocation5 + $0x100] sm:$0xff]
    %v144 = vld [vmem:[#allocation5 + $0x108] sm:$0xff]
    %v145 = vld [vmem:[#allocation5 + $0x110] sm:$0xff]
    %v146 = vld [vmem:[#allocation5 + $0x118] sm:$0xff]
    %v147 = vld [vmem:[#allocation5 + $0x120] sm:$0xff]
    %v148 = vld [vmem:[#allocation5 + $0x128] sm:$0xff]
    %v149 = vld [vmem:[#allocation5 + $0x130] sm:$0xff]
    %v150 = vld [vmem:[#allocation5 + $0x138] sm:$0xff]
    %v151 = vld [vmem:[#allocation5 + $0x140] sm:$0xff]
    %v152 = vld [vmem:[#allocation5 + $0x148] sm:$0xff]
    %v153 = vld [vmem:[#allocation5 + $0x150] sm:$0xff]
    %v154 = vld [vmem:[#allocation5 + $0x158] sm:$0xff]
    %v155 = vld [vmem:[#allocation5 + $0x160] sm:$0xff]
    %v156 = vld [vmem:[#allocation5 + $0x168] sm:$0xff]
    %v157 = vld [vmem:[#allocation5 + $0x170] sm:$0xff]
    %v158 = vld [vmem:[#allocation5 + $0x178] sm:$0xff]
    %v159 = vld [vmem:[#allocation5 + $0x180] sm:$0xff]
    %v160 = vld [vmem:[#allocation5 + $0x188] sm:$0xff]
    %v161 = vld [vmem:[#allocation5 + $0x190] sm:$0xff]
    %v162 = vld [vmem:[#allocation5 + $0x198] sm:$0xff]
    %v163 = vld [vmem:[#allocation5 + $0x1a0] sm:$0xff]
    %v164 = vld [vmem:[#allocation5 + $0x1a8] sm:$0xff]
    %v165 = vld [vmem:[#allocation5 + $0x1b0] sm:$0xff]
    %v166 = vld [vmem:[#allocation5 + $0x1b8] sm:$0xff]
    %v167 = vld [vmem:[#allocation5 + $0x1c0] sm:$0xff]
    %v168 = vld [vmem:[#allocation5 + $0x1c8] sm:$0xff]
    %v169 = vld [vmem:[#allocation5 + $0x1d0] sm:$0xff]
    %v170 = vld [vmem:[#allocation5 + $0x1d8] sm:$0xff]
    %v171 = vld [vmem:[#allocation5 + $0x1e0] sm:$0xff]
    %v172 = vld [vmem:[#allocation5 + $0x1e8] sm:$0xff]
    %v173 = vld [vmem:[#allocation5 + $0x1f0] sm:$0xff]
    %v174 = vld [vmem:[#allocation5 + $0x1f8] sm:$0xff]
    %v175 = vld [vmem:[#allocation5 + $0x200] sm:$0xff]
    %v176 = vld [vmem:[#allocation5 + $0x208] sm:$0xff]
    %v177 = vld [vmem:[#allocation5 + $0x210] sm:$0xff]
    %v178 = vld [vmem:[#allocation5 + $0x218] sm:$0xff]
    %v179 = vld [vmem:[#allocation5 + $0x220] sm:$0xff]
    %v180 = vld [vmem:[#allocation5 + $0x228] sm:$0xff]
    %v181 = vld [vmem:[#allocation5 + $0x230] sm:$0xff]
    %v182 = vld [vmem:[#allocation5 + $0x238] sm:$0xff]
    %v183 = vld [vmem:[#allocation5 + $0x240] sm:$0xff]
    %v184 = vld [vmem:[#allocation5 + $0x248] sm:$0xff]
    %v185 = vld [vmem:[#allocation5 + $0x250] sm:$0xff]
    %v186 = vld [vmem:[#allocation5 + $0x258] sm:$0xff]
    %v187 = vld [vmem:[#allocation5 + $0x260] sm:$0xff]
    %v188 = vld [vmem:[#allocation5 + $0x268] sm:$0xff]
    %v189 = vld [vmem:[#allocation5 + $0x270] sm:$0xff]
    %v190 = vld [vmem:[#allocation5 + $0x278] sm:$0xff]
    %v191 = vld [vmem:[#allocation5 + $0x280] sm:$0xff]
    %v192 = vld [vmem:[#allocation5 + $0x288] sm:$0xff]
    %v193 = vld [vmem:[#allocation5 + $0x290] sm:$0xff]
    %v194 = vld [vmem:[#allocation5 + $0x298] sm:$0xff]
    %v195 = vld [vmem:[#allocation5 + $0x2a0] sm:$0xff]
    %v196 = vld [vmem:[#allocation5 + $0x2a8] sm:$0xff]
    %v197 = vld [vmem:[#allocation5 + $0x2b0] sm:$0xff]
    %v198 = vld [vmem:[#allocation5 + $0x2b8] sm:$0xff]
    %v199 = vld [vmem:[#allocation5 + $0x2c0] sm:$0xff]
    %v200 = vld [vmem:[#allocation5 + $0x2c8] sm:$0xff]
    %v201 = vld [vmem:[#allocation5 + $0x2d0] sm:$0xff]
    %v202 = vld [vmem:[#allocation5 + $0x2d8] sm:$0xff]
    %v203 = vld [vmem:[#allocation5 + $0x2e0] sm:$0xff]
    %v204 = vld [vmem:[#allocation5 + $0x2e8] sm:$0xff]
    %v205 = vld [vmem:[#allocation5 + $0x2f0] sm:$0xff]
    %v206 = vld [vmem:[#allocation5 + $0x2f8] sm:$0xff]
    %v207 = vld [vmem:[#allocation5 + $0x300] sm:$0xff]
    %v208 = vld [vmem:[#allocation5 + $0x308] sm:$0xff]
    %v209 = vld [vmem:[#allocation5 + $0x310] sm:$0xff]
    %v210 = vld [vmem:[#allocation5 + $0x318] sm:$0xff]
    %v211 = vld [vmem:[#allocation5 + $0x320] sm:$0xff]
    %v212 = vld [vmem:[#allocation5 + $0x328] sm:$0xff]
    %v213 = vld [vmem:[#allocation5 + $0x330] sm:$0xff]
    %v214 = vld [vmem:[#allocation5 + $0x338] sm:$0xff]
    %v215 = vld [vmem:[#allocation5 + $0x340] sm:$0xff]
    %v216 = vld [vmem:[#allocation5 + $0x348] sm:$0xff]
    %v217 = vld [vmem:[#allocation5 + $0x350] sm:$0xff]
    %v218 = vld [vmem:[#allocation5 + $0x358] sm:$0xff]
    %v219 = vld [vmem:[#allocation5 + $0x360] sm:$0xff]
    %v220 = vld [vmem:[#allocation5 + $0x368] sm:$0xff]
    %v221 = vld [vmem:[#allocation5 + $0x370] sm:$0xff]
    %v222 = vld [vmem:[#allocation5 + $0x378] sm:$0xff]
    %v223 = vld [vmem:[#allocation5 + $0x380] sm:$0xff]
    %v224 = vld [vmem:[#allocation5 + $0x388] sm:$0xff]
    %v225 = vld [vmem:[#allocation5 + $0x390] sm:$0xff]
    %v226 = vld [vmem:[#allocation5 + $0x398] sm:$0xff]
    %v227 = vld [vmem:[#allocation5 + $0x3a0] sm:$0xff]
    %v228 = vld [vmem:[#allocation5 + $0x3a8] sm:$0xff]
    %v229 = vld [vmem:[#allocation5 + $0x3b0] sm:$0xff]
    %v230 = vld [vmem:[#allocation5 + $0x3b8] sm:$0xff]
    %v231 = vld [vmem:[#allocation5 + $0x3c0] sm:$0xff]
    %v232 = vld [vmem:[#allocation5 + $0x3c8] sm:$0xff]
    %v233 = vld [vmem:[#allocation5 + $0x3d0] sm:$0xff]
    %v234 = vld [vmem:[#allocation5 + $0x3d8] sm:$0xff]
    %v235 = vld [vmem:[#allocation5 + $0x3e0] sm:$0xff]
    %v236 = vld [vmem:[#allocation5 + $0x3e8] sm:$0xff]
    %v237 = vld [vmem:[#allocation5 + $0x3f0] sm:$0xff]
    %v238 = vld [vmem:[#allocation5 + $0x3f8] sm:$0xff]
    %v239 = vld [vmem:[#allocation5 + $0x400] sm:$0xff]
    %v240 = vld [vmem:[#allocation5 + $0x408] sm:$0xff]
    %v241 = vld [vmem:[#allocation5 + $0x410] sm:$0xff]
    %v242 = vld [vmem:[#allocation5 + $0x418] sm:$0xff]
    %v243 = vld [vmem:[#allocation5 + $0x420] sm:$0xff]
    %v244 = vld [vmem:[#allocation5 + $0x428] sm:$0xff]
    %v245 = vld [vmem:[#allocation5 + $0x430] sm:$0xff]
    %v246 = vld [vmem:[#allocation5 + $0x438] sm:$0xff]
    %v247 = vld [vmem:[#allocation5 + $0x440] sm:$0xff]
    %v248 = vld [vmem:[#allocation5 + $0x448] sm:$0xff]
    %v249 = vld [vmem:[#allocation5 + $0x450] sm:$0xff]
    %v250 = vld [vmem:[#allocation5 + $0x458] sm:$0xff]
    %v251 = vld [vmem:[#allocation5 + $0x460] sm:$0xff]
    %v252 = vld [vmem:[#allocation5 + $0x468] sm:$0xff]
    %v253 = vld [vmem:[#allocation5 + $0x470] sm:$0xff]
    %v254 = vld [vmem:[#allocation5 + $0x478] sm:$0xff]
    %v255 = vld [vmem:[#allocation5 + $0x480] sm:$0xff]
    %v256 = vld [vmem:[#allocation5 + $0x488] sm:$0xff]
    %v257 = vld [vmem:[#allocation5 + $0x490] sm:$0xff]
    %v258 = vld [vmem:[#allocation5 + $0x498] sm:$0xff]
    %v259 = vld [vmem:[#allocation5 + $0x4a0] sm:$0xff]
    %v260 = vld [vmem:[#allocation5 + $0x4a8] sm:$0xff]
    %v261 = vld [vmem:[#allocation5 + $0x4b0] sm:$0xff]
    %v262 = vld [vmem:[#allocation5 + $0x4b8] sm:$0xff]
    %v263 = vld [vmem:[#allocation5 + $0x4c0] sm:$0xff]
    %v264 = vld [vmem:[#allocation5 + $0x4c8] sm:$0xff]
    %v265 = vld [vmem:[#allocation5 + $0x4d0] sm:$0xff]
    %v266 = vld [vmem:[#allocation5 + $0x4d8] sm:$0xff]
    %v267 = vld [vmem:[#allocation5 + $0x4e0] sm:$0xff]
    %v268 = vld [vmem:[#allocation5 + $0x4e8] sm:$0xff]
    %v269 = vld [vmem:[#allocation5 + $0x4f0] sm:$0xff]
    %v270 = vld [vmem:[#allocation5 + $0x4f8] sm:$0xff]
    %v271 = vld [vmem:[#allocation5 + $0x500] sm:$0xff]
    %v272 = vld [vmem:[#allocation5 + $0x508] sm:$0xff]
    %v273 = vld [vmem:[#allocation5 + $0x510] sm:$0xff]
    %v274 = vld [vmem:[#allocation5 + $0x518] sm:$0xff]
    %v275 = vld [vmem:[#allocation5 + $0x520] sm:$0xff]
    %v276 = vld [vmem:[#allocation5 + $0x528] sm:$0xff]
    %v277 = vld [vmem:[#allocation5 + $0x530] sm:$0xff]
    %v278 = vld [vmem:[#allocation5 + $0x538] sm:$0xff]
    %v279 = vld [vmem:[#allocation5 + $0x540] sm:$0xff]
    %v280 = vld [vmem:[#allocation5 + $0x548] sm:$0xff]
    %v281 = vld [vmem:[#allocation5 + $0x550] sm:$0xff]
    %v282 = vld [vmem:[#allocation5 + $0x558] sm:$0xff]
    %v283 = vld [vmem:[#allocation5 + $0x560] sm:$0xff]
    %v284 = vld [vmem:[#allocation5 + $0x568] sm:$0xff]
    %v285 = vld [vmem:[#allocation5 + $0x570] sm:$0xff]
    %v286 = vld [vmem:[#allocation5 + $0x578] sm:$0xff]
    %v287 = vld [vmem:[#allocation5 + $0x580] sm:$0xff]
    %v288 = vld [vmem:[#allocation5 + $0x588] sm:$0xff]
    %v289 = vld [vmem:[#allocation5 + $0x590] sm:$0xff]
    %v290 = vld [vmem:[#allocation5 + $0x598] sm:$0xff]
    %v291 = vld [vmem:[#allocation5 + $0x5a0] sm:$0xff]
    %v292 = vld [vmem:[#allocation5 + $0x5a8] sm:$0xff]
    %v293 = vld [vmem:[#allocation5 + $0x5b0] sm:$0xff]
    %v294 = vld [vmem:[#allocation5 + $0x5b8] sm:$0xff]
    %v295 = vld [vmem:[#allocation5 + $0x5c0] sm:$0xff]
    %v296 = vld [vmem:[#allocation5 + $0x5c8] sm:$0xff]
    %v297 = vld [vmem:[#allocation5 + $0x5d0] sm:$0xff]
    %v298 = vld [vmem:[#allocation5 + $0x5d8] sm:$0xff]
    %v299 = vld [vmem:[#allocation5 + $0x5e0] sm:$0xff]
    %v300 = vld [vmem:[#allocation5 + $0x5e8] sm:$0xff]
    %v301 = vld [vmem:[#allocation5 + $0x5f0] sm:$0xff]
    %v302 = vld [vmem:[#allocation5 + $0x5f8] sm:$0xff]
    %v303 = vld [vmem:[#allocation5 + $0x600] sm:$0xff]
    %v304 = vld [vmem:[#allocation5 + $0x608] sm:$0xff]
    %v305 = vld [vmem:[#allocation5 + $0x610] sm:$0xff]
    %v306 = vld [vmem:[#allocation5 + $0x618] sm:$0xff]
    %v307 = vld [vmem:[#allocation5 + $0x620] sm:$0xff]
    %v308 = vld [vmem:[#allocation5 + $0x628] sm:$0xff]
    %v309 = vld [vmem:[#allocation5 + $0x630] sm:$0xff]
    %v310 = vld [vmem:[#allocation5 + $0x638] sm:$0xff]
    %v311 = vld [vmem:[#allocation5 + $0x640] sm:$0xff]
    %v312 = vld [vmem:[#allocation5 + $0x648] sm:$0xff]
    %v313 = vld [vmem:[#allocation5 + $0x650] sm:$0xff]
    %v314 = vld [vmem:[#allocation5 + $0x658] sm:$0xff]
    %v315 = vld [vmem:[#allocation5 + $0x660] sm:$0xff]
    %v316 = vld [vmem:[#allocation5 + $0x668] sm:$0xff]
    %v317 = vld [vmem:[#allocation5 + $0x670] sm:$0xff]
    %v318 = vld [vmem:[#allocation5 + $0x678] sm:$0xff]
    %v319 = vld [vmem:[#allocation5 + $0x680] sm:$0xff]
    %v320 = vld [vmem:[#allocation5 + $0x688] sm:$0xff]
    %v321 = vld [vmem:[#allocation5 + $0x690] sm:$0xff]
    %v322 = vld [vmem:[#allocation5 + $0x698] sm:$0xff]
    %v323 = vld [vmem:[#allocation5 + $0x6a0] sm:$0xff]
    %v324 = vld [vmem:[#allocation5 + $0x6a8] sm:$0xff]
    %v325 = vld [vmem:[#allocation5 + $0x6b0] sm:$0xff]
    %v326 = vld [vmem:[#allocation5 + $0x6b8] sm:$0xff]
    %v327 = vld [vmem:[#allocation5 + $0x6c0] sm:$0xff]
    %v328 = vld [vmem:[#allocation5 + $0x6c8] sm:$0xff]
    %v329 = vld [vmem:[#allocation5 + $0x6d0] sm:$0xff]
    %v330 = vld [vmem:[#allocation5 + $0x6d8] sm:$0xff]
    %v331 = vld [vmem:[#allocation5 + $0x6e0] sm:$0xff]
    %v332 = vld [vmem:[#allocation5 + $0x6e8] sm:$0xff]
    %v333 = vld [vmem:[#allocation5 + $0x6f0] sm:$0xff]
    %v334 = vld [vmem:[#allocation5 + $0x6f8] sm:$0xff]
    %v335 = vld [vmem:[#allocation5 + $0x700] sm:$0xff]
    %v336 = vld [vmem:[#allocation5 + $0x708] sm:$0xff]
    %v337 = vld [vmem:[#allocation5 + $0x710] sm:$0xff]
    %v338 = vld [vmem:[#allocation5 + $0x718] sm:$0xff]
    %v339 = vld [vmem:[#allocation5 + $0x720] sm:$0xff]
    %v340 = vld [vmem:[#allocation5 + $0x728] sm:$0xff]
    %v341 = vld [vmem:[#allocation5 + $0x730] sm:$0xff]
    %v342 = vld [vmem:[#allocation5 + $0x738] sm:$0xff]
    %v343 = vld [vmem:[#allocation5 + $0x740] sm:$0xff]
    %v344 = vld [vmem:[#allocation5 + $0x748] sm:$0xff]
    %v345 = vld [vmem:[#allocation5 + $0x750] sm:$0xff]
    %v346 = vld [vmem:[#allocation5 + $0x758] sm:$0xff]
    %v347 = vld [vmem:[#allocation5 + $0x760] sm:$0xff]
    %v348 = vld [vmem:[#allocation5 + $0x768] sm:$0xff]
    %v349 = vld [vmem:[#allocation5 + $0x770] sm:$0xff]
    %v350 = vld [vmem:[#allocation5 + $0x778] sm:$0xff]
    %v351 = vld [vmem:[#allocation5 + $0x780] sm:$0xff]
    %v352 = vld [vmem:[#allocation5 + $0x788] sm:$0xff]
    %v353 = vld [vmem:[#allocation5 + $0x790] sm:$0xff]
    %v354 = vld [vmem:[#allocation5 + $0x798] sm:$0xff]
    %v355 = vld [vmem:[#allocation5 + $0x7a0] sm:$0xff]
    %v356 = vld [vmem:[#allocation5 + $0x7a8] sm:$0xff]
    %v357 = vld [vmem:[#allocation5 + $0x7b0] sm:$0xff]
    %v358 = vld [vmem:[#allocation5 + $0x7b8] sm:$0xff]
    %v359 = vld [vmem:[#allocation5 + $0x7c0] sm:$0xff]
    %v360 = vld [vmem:[#allocation5 + $0x7c8] sm:$0xff]
    %v361 = vld [vmem:[#allocation5 + $0x7d0] sm:$0xff]
    %v362 = vld [vmem:[#allocation5 + $0x7d8] sm:$0xff]
    %v363 = vld [vmem:[#allocation5 + $0x7e0] sm:$0xff]
    %v364 = vld [vmem:[#allocation5 + $0x7e8] sm:$0xff]
    %v365 = vld [vmem:[#allocation5 + $0x7f0] sm:$0xff]
    %v366 = vld [vmem:[#allocation5 + $0x7f8] sm:$0xff]
    %v623 = vunpack.c.l.b16 %v111
    %v624 = vunpack.c.h.b16 %v111
    %v625 = vunpack.c.l.b16 %v112
    %v626 = vunpack.c.h.b16 %v112
    %v627 = vunpack.c.l.b16 %v113
    %v628 = vunpack.c.h.b16 %v113
    %v629 = vunpack.c.l.b16 %v114
    %v630 = vunpack.c.h.b16 %v114
    %v631 = vunpack.c.l.b16 %v115
    %v632 = vunpack.c.h.b16 %v115
    %v633 = vunpack.c.l.b16 %v116
    %v634 = vunpack.c.h.b16 %v116
    %v635 = vunpack.c.l.b16 %v117
    %v636 = vunpack.c.h.b16 %v117
    %v637 = vunpack.c.l.b16 %v118
    %v638 = vunpack.c.h.b16 %v118
    %v639 = vunpack.c.l.b16 %v119
    %v640 = vunpack.c.h.b16 %v119
    %v641 = vunpack.c.l.b16 %v120
    %v642 = vunpack.c.h.b16 %v120
    %v643 = vunpack.c.l.b16 %v121
    %v644 = vunpack.c.h.b16 %v121
    %v645 = vunpack.c.l.b16 %v122
    %v646 = vunpack.c.h.b16 %v122
    %v647 = vunpack.c.l.b16 %v123
    %v648 = vunpack.c.h.b16 %v123
    %v649 = vunpack.c.l.b16 %v124
    %v650 = vunpack.c.h.b16 %v124
    %v651 = vunpack.c.l.b16 %v125
    %v652 = vunpack.c.h.b16 %v125
    %v653 = vunpack.c.l.b16 %v126
    %v654 = vunpack.c.h.b16 %v126
    %v655 = vunpack.c.l.b16 %v127
    %v656 = vunpack.c.h.b16 %v127
    %v657 = vunpack.c.l.b16 %v128
    %v658 = vunpack.c.h.b16 %v128
    %v659 = vunpack.c.l.b16 %v129
    %v660 = vunpack.c.h.b16 %v129
    %v661 = vunpack.c.l.b16 %v130
    %v662 = vunpack.c.h.b16 %v130
    %v663 = vunpack.c.l.b16 %v131
    %v664 = vunpack.c.h.b16 %v131
    %v665 = vunpack.c.l.b16 %v132
    %v666 = vunpack.c.h.b16 %v132
    %v667 = vunpack.c.l.b16 %v133
    %v668 = vunpack.c.h.b16 %v133
    %v669 = vunpack.c.l.b16 %v134
    %v670 = vunpack.c.h.b16 %v134
    %v671 = vunpack.c.l.b16 %v135
    %v672 = vunpack.c.h.b16 %v135
    %v673 = vunpack.c.l.b16 %v136
    %v674 = vunpack.c.h.b16 %v136
    %v675 = vunpack.c.l.b16 %v137
    %v676 = vunpack.c.h.b16 %v137
    %v677 = vunpack.c.l.b16 %v138
    %v678 = vunpack.c.h.b16 %v138
    %v679 = vunpack.c.l.b16 %v139
    %v680 = vunpack.c.h.b16 %v139
    %v681 = vunpack.c.l.b16 %v140
    %v682 = vunpack.c.h.b16 %v140
    %v683 = vunpack.c.l.b16 %v141
    %v684 = vunpack.c.h.b16 %v141
    %v685 = vunpack.c.l.b16 %v142
    %v686 = vunpack.c.h.b16 %v142
    %v687 = vunpack.c.l.b16 %v143
    %v688 = vunpack.c.h.b16 %v143
    %v689 = vunpack.c.l.b16 %v144
    %v690 = vunpack.c.h.b16 %v144
    %v691 = vunpack.c.l.b16 %v145
    %v692 = vunpack.c.h.b16 %v145
    %v693 = vunpack.c.l.b16 %v146
    %v694 = vunpack.c.h.b16 %v146
    %v695 = vunpack.c.l.b16 %v147
    %v696 = vunpack.c.h.b16 %v147
    %v697 = vunpack.c.l.b16 %v148
    %v698 = vunpack.c.h.b16 %v148
    %v699 = vunpack.c.l.b16 %v149
    %v700 = vunpack.c.h.b16 %v149
    %v701 = vunpack.c.l.b16 %v150
    %v702 = vunpack.c.h.b16 %v150
    %v703 = vunpack.c.l.b16 %v151
    %v704 = vunpack.c.h.b16 %v151
    %v705 = vunpack.c.l.b16 %v152
    %v706 = vunpack.c.h.b16 %v152
    %v707 = vunpack.c.l.b16 %v153
    %v708 = vunpack.c.h.b16 %v153
    %v709 = vunpack.c.l.b16 %v154
    %v710 = vunpack.c.h.b16 %v154
    %v711 = vunpack.c.l.b16 %v155
    %v712 = vunpack.c.h.b16 %v155
    %v713 = vunpack.c.l.b16 %v156
    %v714 = vunpack.c.h.b16 %v156
    %v715 = vunpack.c.l.b16 %v157
    %v716 = vunpack.c.h.b16 %v157
    %v717 = vunpack.c.l.b16 %v158
    %v718 = vunpack.c.h.b16 %v158
    %v719 = vunpack.c.l.b16 %v159
    %v720 = vunpack.c.h.b16 %v159
    %v721 = vunpack.c.l.b16 %v160
    %v722 = vunpack.c.h.b16 %v160
    %v723 = vunpack.c.l.b16 %v161
    %v724 = vunpack.c.h.b16 %v161
    %v725 = vunpack.c.l.b16 %v162
    %v726 = vunpack.c.h.b16 %v162
    %v727 = vunpack.c.l.b16 %v163
    %v728 = vunpack.c.h.b16 %v163
    %v729 = vunpack.c.l.b16 %v164
    %v730 = vunpack.c.h.b16 %v164
    %v731 = vunpack.c.l.b16 %v165
    %v732 = vunpack.c.h.b16 %v165
    %v733 = vunpack.c.l.b16 %v166
    %v734 = vunpack.c.h.b16 %v166
    %v735 = vunpack.c.l.b16 %v167
    %v736 = vunpack.c.h.b16 %v167
    %v737 = vunpack.c.l.b16 %v168
    %v738 = vunpack.c.h.b16 %v168
    %v739 = vunpack.c.l.b16 %v169
    %v740 = vunpack.c.h.b16 %v169
    %v741 = vunpack.c.l.b16 %v170
    %v742 = vunpack.c.h.b16 %v170
    %v743 = vunpack.c.l.b16 %v171
    %v744 = vunpack.c.h.b16 %v171
    %v745 = vunpack.c.l.b16 %v172
    %v746 = vunpack.c.h.b16 %v172
    %v747 = vunpack.c.l.b16 %v173
    %v748 = vunpack.c.h.b16 %v173
    %v749 = vunpack.c.l.b16 %v174
    %v750 = vunpack.c.h.b16 %v174
    %v751 = vunpack.c.l.b16 %v175
    %v752 = vunpack.c.h.b16 %v175
    %v753 = vunpack.c.l.b16 %v176
    %v754 = vunpack.c.h.b16 %v176
    %v755 = vunpack.c.l.b16 %v177
    %v756 = vunpack.c.h.b16 %v177
    %v757 = vunpack.c.l.b16 %v178
    %v758 = vunpack.c.h.b16 %v178
    %v759 = vunpack.c.l.b16 %v179
    %v760 = vunpack.c.h.b16 %v179
    %v761 = vunpack.c.l.b16 %v180
    %v762 = vunpack.c.h.b16 %v180
    %v763 = vunpack.c.l.b16 %v181
    %v764 = vunpack.c.h.b16 %v181
    %v765 = vunpack.c.l.b16 %v182
    %v766 = vunpack.c.h.b16 %v182
    %v767 = vunpack.c.l.b16 %v183
    %v768 = vunpack.c.h.b16 %v183
    %v769 = vunpack.c.l.b16 %v184
    %v770 = vunpack.c.h.b16 %v184
    %v771 = vunpack.c.l.b16 %v185
    %v772 = vunpack.c.h.b16 %v185
    %v773 = vunpack.c.l.b16 %v186
    %v774 = vunpack.c.h.b16 %v186
    %v775 = vunpack.c.l.b16 %v187
    %v776 = vunpack.c.h.b16 %v187
    %v777 = vunpack.c.l.b16 %v188
    %v778 = vunpack.c.h.b16 %v188
    %v779 = vunpack.c.l.b16 %v189
    %v780 = vunpack.c.h.b16 %v189
    %v781 = vunpack.c.l.b16 %v190
    %v782 = vunpack.c.h.b16 %v190
    %v783 = vunpack.c.l.b16 %v191
    %v784 = vunpack.c.h.b16 %v191
    %v785 = vunpack.c.l.b16 %v192
    %v786 = vunpack.c.h.b16 %v192
    %v787 = vunpack.c.l.b16 %v193
    %v788 = vunpack.c.h.b16 %v193
    %v789 = vunpack.c.l.b16 %v194
    %v790 = vunpack.c.h.b16 %v194
    %v791 = vunpack.c.l.b16 %v195
    %v792 = vunpack.c.h.b16 %v195
    %v793 = vunpack.c.l.b16 %v196
    %v794 = vunpack.c.h.b16 %v196
    %v795 = vunpack.c.l.b16 %v197
    %v796 = vunpack.c.h.b16 %v197
    %v797 = vunpack.c.l.b16 %v198
    %v798 = vunpack.c.h.b16 %v198
    %v799 = vunpack.c.l.b16 %v199
    %v800 = vunpack.c.h.b16 %v199
    %v801 = vunpack.c.l.b16 %v200
    %v802 = vunpack.c.h.b16 %v200
    %v803 = vunpack.c.l.b16 %v201
    %v804 = vunpack.c.h.b16 %v201
    %v805 = vunpack.c.l.b16 %v202
    %v806 = vunpack.c.h.b16 %v202
    %v807 = vunpack.c.l.b16 %v203
    %v808 = vunpack.c.h.b16 %v203
    %v809 = vunpack.c.l.b16 %v204
    %v810 = vunpack.c.h.b16 %v204
    %v811 = vunpack.c.l.b16 %v205
    %v812 = vunpack.c.h.b16 %v205
    %v813 = vunpack.c.l.b16 %v206
    %v814 = vunpack.c.h.b16 %v206
    %v815 = vunpack.c.l.b16 %v207
    %v816 = vunpack.c.h.b16 %v207
    %v817 = vunpack.c.l.b16 %v208
    %v818 = vunpack.c.h.b16 %v208
    %v819 = vunpack.c.l.b16 %v209
    %v820 = vunpack.c.h.b16 %v209
    %v821 = vunpack.c.l.b16 %v210
    %v822 = vunpack.c.h.b16 %v210
    %v823 = vunpack.c.l.b16 %v211
    %v824 = vunpack.c.h.b16 %v211
    %v825 = vunpack.c.l.b16 %v212
    %v826 = vunpack.c.h.b16 %v212
    %v827 = vunpack.c.l.b16 %v213
    %v828 = vunpack.c.h.b16 %v213
    %v829 = vunpack.c.l.b16 %v214
    %v830 = vunpack.c.h.b16 %v214
    %v831 = vunpack.c.l.b16 %v215
    %v832 = vunpack.c.h.b16 %v215
    %v833 = vunpack.c.l.b16 %v216
    %v834 = vunpack.c.h.b16 %v216
    %v835 = vunpack.c.l.b16 %v217
    %v836 = vunpack.c.h.b16 %v217
    %v837 = vunpack.c.l.b16 %v218
    %v838 = vunpack.c.h.b16 %v218
    %v839 = vunpack.c.l.b16 %v219
    %v840 = vunpack.c.h.b16 %v219
    %v841 = vunpack.c.l.b16 %v220
    %v842 = vunpack.c.h.b16 %v220
    %v843 = vunpack.c.l.b16 %v221
    %v844 = vunpack.c.h.b16 %v221
    %v845 = vunpack.c.l.b16 %v222
    %v846 = vunpack.c.h.b16 %v222
    %v847 = vunpack.c.l.b16 %v223
    %v848 = vunpack.c.h.b16 %v223
    %v849 = vunpack.c.l.b16 %v224
    %v850 = vunpack.c.h.b16 %v224
    %v851 = vunpack.c.l.b16 %v225
    %v852 = vunpack.c.h.b16 %v225
    %v853 = vunpack.c.l.b16 %v226
    %v854 = vunpack.c.h.b16 %v226
    %v855 = vunpack.c.l.b16 %v227
    %v856 = vunpack.c.h.b16 %v227
    %v857 = vunpack.c.l.b16 %v228
    %v858 = vunpack.c.h.b16 %v228
    %v859 = vunpack.c.l.b16 %v229
    %v860 = vunpack.c.h.b16 %v229
    %v861 = vunpack.c.l.b16 %v230
    %v862 = vunpack.c.h.b16 %v230
    %v863 = vunpack.c.l.b16 %v231
    %v864 = vunpack.c.h.b16 %v231
    %v865 = vunpack.c.l.b16 %v232
    %v866 = vunpack.c.h.b16 %v232
    %v867 = vunpack.c.l.b16 %v233
    %v868 = vunpack.c.h.b16 %v233
    %v869 = vunpack.c.l.b16 %v234
    %v870 = vunpack.c.h.b16 %v234
    %v871 = vunpack.c.l.b16 %v235
    %v872 = vunpack.c.h.b16 %v235
    %v873 = vunpack.c.l.b16 %v236
    %v874 = vunpack.c.h.b16 %v236
    %v875 = vunpack.c.l.b16 %v237
    %v876 = vunpack.c.h.b16 %v237
    %v877 = vunpack.c.l.b16 %v238
    %v878 = vunpack.c.h.b16 %v238
    %v879 = vunpack.c.l.b16 %v239
    %v880 = vunpack.c.h.b16 %v239
    %v881 = vunpack.c.l.b16 %v240
    %v882 = vunpack.c.h.b16 %v240
    %v883 = vunpack.c.l.b16 %v241
    %v884 = vunpack.c.h.b16 %v241
    %v885 = vunpack.c.l.b16 %v242
    %v886 = vunpack.c.h.b16 %v242
    %v887 = vunpack.c.l.b16 %v243
    %v888 = vunpack.c.h.b16 %v243
    %v889 = vunpack.c.l.b16 %v244
    %v890 = vunpack.c.h.b16 %v244
    %v891 = vunpack.c.l.b16 %v245
    %v892 = vunpack.c.h.b16 %v245
    %v893 = vunpack.c.l.b16 %v246
    %v894 = vunpack.c.h.b16 %v246
    %v895 = vunpack.c.l.b16 %v247
    %v896 = vunpack.c.h.b16 %v247
    %v897 = vunpack.c.l.b16 %v248
    %v898 = vunpack.c.h.b16 %v248
    %v899 = vunpack.c.l.b16 %v249
    %v900 = vunpack.c.h.b16 %v249
    %v901 = vunpack.c.l.b16 %v250
    %v902 = vunpack.c.h.b16 %v250
    %v903 = vunpack.c.l.b16 %v251
    %v904 = vunpack.c.h.b16 %v251
    %v905 = vunpack.c.l.b16 %v252
    %v906 = vunpack.c.h.b16 %v252
    %v907 = vunpack.c.l.b16 %v253
    %v908 = vunpack.c.h.b16 %v253
    %v909 = vunpack.c.l.b16 %v254
    %v910 = vunpack.c.h.b16 %v254
    %v911 = vunpack.c.l.b16 %v255
    %v912 = vunpack.c.h.b16 %v255
    %v913 = vunpack.c.l.b16 %v256
    %v914 = vunpack.c.h.b16 %v256
    %v915 = vunpack.c.l.b16 %v257
    %v916 = vunpack.c.h.b16 %v257
    %v917 = vunpack.c.l.b16 %v258
    %v918 = vunpack.c.h.b16 %v258
    %v919 = vunpack.c.l.b16 %v259
    %v920 = vunpack.c.h.b16 %v259
    %v921 = vunpack.c.l.b16 %v260
    %v922 = vunpack.c.h.b16 %v260
    %v923 = vunpack.c.l.b16 %v261
    %v924 = vunpack.c.h.b16 %v261
    %v925 = vunpack.c.l.b16 %v262
    %v926 = vunpack.c.h.b16 %v262
    %v927 = vunpack.c.l.b16 %v263
    %v928 = vunpack.c.h.b16 %v263
    %v929 = vunpack.c.l.b16 %v264
    %v930 = vunpack.c.h.b16 %v264
    %v931 = vunpack.c.l.b16 %v265
    %v932 = vunpack.c.h.b16 %v265
    %v933 = vunpack.c.l.b16 %v266
    %v934 = vunpack.c.h.b16 %v266
    %v935 = vunpack.c.l.b16 %v267
    %v936 = vunpack.c.h.b16 %v267
    %v937 = vunpack.c.l.b16 %v268
    %v938 = vunpack.c.h.b16 %v268
    %v939 = vunpack.c.l.b16 %v269
    %v940 = vunpack.c.h.b16 %v269
    %v941 = vunpack.c.l.b16 %v270
    %v942 = vunpack.c.h.b16 %v270
    %v943 = vunpack.c.l.b16 %v271
    %v944 = vunpack.c.h.b16 %v271
    %v945 = vunpack.c.l.b16 %v272
    %v946 = vunpack.c.h.b16 %v272
    %v947 = vunpack.c.l.b16 %v273
    %v948 = vunpack.c.h.b16 %v273
    %v949 = vunpack.c.l.b16 %v274
    %v950 = vunpack.c.h.b16 %v274
    %v951 = vunpack.c.l.b16 %v275
    %v952 = vunpack.c.h.b16 %v275
    %v953 = vunpack.c.l.b16 %v276
    %v954 = vunpack.c.h.b16 %v276
    %v955 = vunpack.c.l.b16 %v277
    %v956 = vunpack.c.h.b16 %v277
    %v957 = vunpack.c.l.b16 %v278
    %v958 = vunpack.c.h.b16 %v278
    %v959 = vunpack.c.l.b16 %v279
    %v960 = vunpack.c.h.b16 %v279
    %v961 = vunpack.c.l.b16 %v280
    %v962 = vunpack.c.h.b16 %v280
    %v963 = vunpack.c.l.b16 %v281
    %v964 = vunpack.c.h.b16 %v281
    %v965 = vunpack.c.l.b16 %v282
    %v966 = vunpack.c.h.b16 %v282
    %v967 = vunpack.c.l.b16 %v283
    %v968 = vunpack.c.h.b16 %v283
    %v969 = vunpack.c.l.b16 %v284
    %v970 = vunpack.c.h.b16 %v284
    %v971 = vunpack.c.l.b16 %v285
    %v972 = vunpack.c.h.b16 %v285
    %v973 = vunpack.c.l.b16 %v286
    %v974 = vunpack.c.h.b16 %v286
    %v975 = vunpack.c.l.b16 %v287
    %v976 = vunpack.c.h.b16 %v287
    %v977 = vunpack.c.l.b16 %v288
    %v978 = vunpack.c.h.b16 %v288
    %v979 = vunpack.c.l.b16 %v289
    %v980 = vunpack.c.h.b16 %v289
    %v981 = vunpack.c.l.b16 %v290
    %v982 = vunpack.c.h.b16 %v290
    %v983 = vunpack.c.l.b16 %v291
    %v984 = vunpack.c.h.b16 %v291
    %v985 = vunpack.c.l.b16 %v292
    %v986 = vunpack.c.h.b16 %v292
    %v987 = vunpack.c.l.b16 %v293
    %v988 = vunpack.c.h.b16 %v293
    %v989 = vunpack.c.l.b16 %v294
    %v990 = vunpack.c.h.b16 %v294
    %v991 = vunpack.c.l.b16 %v295
    %v992 = vunpack.c.h.b16 %v295
    %v993 = vunpack.c.l.b16 %v296
    %v994 = vunpack.c.h.b16 %v296
    %v995 = vunpack.c.l.b16 %v297
    %v996 = vunpack.c.h.b16 %v297
    %v997 = vunpack.c.l.b16 %v298
    %v998 = vunpack.c.h.b16 %v298
    %v999 = vunpack.c.l.b16 %v299
    %v1000 = vunpack.c.h.b16 %v299
    %v1001 = vunpack.c.l.b16 %v300
    %v1002 = vunpack.c.h.b16 %v300
    %v1003 = vunpack.c.l.b16 %v301
    %v1004 = vunpack.c.h.b16 %v301
    %v1005 = vunpack.c.l.b16 %v302
    %v1006 = vunpack.c.h.b16 %v302
    %v1007 = vunpack.c.l.b16 %v303
    %v1008 = vunpack.c.h.b16 %v303
    %v1009 = vunpack.c.l.b16 %v304
    %v1010 = vunpack.c.h.b16 %v304
    %v1011 = vunpack.c.l.b16 %v305
    %v1012 = vunpack.c.h.b16 %v305
    %v1013 = vunpack.c.l.b16 %v306
    %v1014 = vunpack.c.h.b16 %v306
    %v1015 = vunpack.c.l.b16 %v307
    %v1016 = vunpack.c.h.b16 %v307
    %v1017 = vunpack.c.l.b16 %v308
    %v1018 = vunpack.c.h.b16 %v308
    %v1019 = vunpack.c.l.b16 %v309
    %v1020 = vunpack.c.h.b16 %v309
    %v1021 = vunpack.c.l.b16 %v310
    %v1022 = vunpack.c.h.b16 %v310
    %v1023 = vunpack.c.l.b16 %v311
    %v1024 = vunpack.c.h.b16 %v311
    %v1025 = vunpack.c.l.b16 %v312
    %v1026 = vunpack.c.h.b16 %v312
    %v1027 = vunpack.c.l.b16 %v313
    %v1028 = vunpack.c.h.b16 %v313
    %v1029 = vunpack.c.l.b16 %v314
    %v1030 = vunpack.c.h.b16 %v314
    %v1031 = vunpack.c.l.b16 %v315
    %v1032 = vunpack.c.h.b16 %v315
    %v1033 = vunpack.c.l.b16 %v316
    %v1034 = vunpack.c.h.b16 %v316
    %v1035 = vunpack.c.l.b16 %v317
    %v1036 = vunpack.c.h.b16 %v317
    %v1037 = vunpack.c.l.b16 %v318
    %v1038 = vunpack.c.h.b16 %v318
    %v1039 = vunpack.c.l.b16 %v319
    %v1040 = vunpack.c.h.b16 %v319
    %v1041 = vunpack.c.l.b16 %v320
    %v1042 = vunpack.c.h.b16 %v320
    %v1043 = vunpack.c.l.b16 %v321
    %v1044 = vunpack.c.h.b16 %v321
    %v1045 = vunpack.c.l.b16 %v322
    %v1046 = vunpack.c.h.b16 %v322
    %v1047 = vunpack.c.l.b16 %v323
    %v1048 = vunpack.c.h.b16 %v323
    %v1049 = vunpack.c.l.b16 %v324
    %v1050 = vunpack.c.h.b16 %v324
    %v1051 = vunpack.c.l.b16 %v325
    %v1052 = vunpack.c.h.b16 %v325
    %v1053 = vunpack.c.l.b16 %v326
    %v1054 = vunpack.c.h.b16 %v326
    %v1055 = vunpack.c.l.b16 %v327
    %v1056 = vunpack.c.h.b16 %v327
    %v1057 = vunpack.c.l.b16 %v328
    %v1058 = vunpack.c.h.b16 %v328
    %v1059 = vunpack.c.l.b16 %v329
    %v1060 = vunpack.c.h.b16 %v329
    %v1061 = vunpack.c.l.b16 %v330
    %v1062 = vunpack.c.h.b16 %v330
    %v1063 = vunpack.c.l.b16 %v331
    %v1064 = vunpack.c.h.b16 %v331
    %v1065 = vunpack.c.l.b16 %v332
    %v1066 = vunpack.c.h.b16 %v332
    %v1067 = vunpack.c.l.b16 %v333
    %v1068 = vunpack.c.h.b16 %v333
    %v1069 = vunpack.c.l.b16 %v334
    %v1070 = vunpack.c.h.b16 %v334
    %v1071 = vunpack.c.l.b16 %v335
    %v1072 = vunpack.c.h.b16 %v335
    %v1073 = vunpack.c.l.b16 %v336
    %v1074 = vunpack.c.h.b16 %v336
    %v1075 = vunpack.c.l.b16 %v337
    %v1076 = vunpack.c.h.b16 %v337
    %v1077 = vunpack.c.l.b16 %v338
    %v1078 = vunpack.c.h.b16 %v338
    %v1079 = vunpack.c.l.b16 %v339
    %v1080 = vunpack.c.h.b16 %v339
    %v1081 = vunpack.c.l.b16 %v340
    %v1082 = vunpack.c.h.b16 %v340
    %v1083 = vunpack.c.l.b16 %v341
    %v1084 = vunpack.c.h.b16 %v341
    %v1085 = vunpack.c.l.b16 %v342
    %v1086 = vunpack.c.h.b16 %v342
    %v1087 = vunpack.c.l.b16 %v343
    %v1088 = vunpack.c.h.b16 %v343
    %v1089 = vunpack.c.l.b16 %v344
    %v1090 = vunpack.c.h.b16 %v344
    %v1091 = vunpack.c.l.b16 %v345
    %v1092 = vunpack.c.h.b16 %v345
    %v1093 = vunpack.c.l.b16 %v346
    %v1094 = vunpack.c.h.b16 %v346
    %v1095 = vunpack.c.l.b16 %v347
    %v1096 = vunpack.c.h.b16 %v347
    %v1097 = vunpack.c.l.b16 %v348
    %v1098 = vunpack.c.h.b16 %v348
    %v1099 = vunpack.c.l.b16 %v349
    %v1100 = vunpack.c.h.b16 %v349
    %v1101 = vunpack.c.l.b16 %v350
    %v1102 = vunpack.c.h.b16 %v350
    %v1103 = vunpack.c.l.b16 %v351
    %v1104 = vunpack.c.h.b16 %v351
    %v1105 = vunpack.c.l.b16 %v352
    %v1106 = vunpack.c.h.b16 %v352
    %v1107 = vunpack.c.l.b16 %v353
    %v1108 = vunpack.c.h.b16 %v353
    %v1109 = vunpack.c.l.b16 %v354
    %v1110 = vunpack.c.h.b16 %v354
    %v1111 = vunpack.c.l.b16 %v355
    %v1112 = vunpack.c.h.b16 %v355
    %v1113 = vunpack.c.l.b16 %v356
    %v1114 = vunpack.c.h.b16 %v356
    %v1115 = vunpack.c.l.b16 %v357
    %v1116 = vunpack.c.h.b16 %v357
    %v1117 = vunpack.c.l.b16 %v358
    %v1118 = vunpack.c.h.b16 %v358
    %v1119 = vunpack.c.l.b16 %v359
    %v1120 = vunpack.c.h.b16 %v359
    %v1121 = vunpack.c.l.b16 %v360
    %v1122 = vunpack.c.h.b16 %v360
    %v1123 = vunpack.c.l.b16 %v361
    %v1124 = vunpack.c.h.b16 %v361
    %v1125 = vunpack.c.l.b16 %v362
    %v1126 = vunpack.c.h.b16 %v362
    %v1127 = vunpack.c.l.b16 %v363
    %v1128 = vunpack.c.h.b16 %v363
    %v1129 = vunpack.c.l.b16 %v364
    %v1130 = vunpack.c.h.b16 %v364
    %v1131 = vunpack.c.l.b16 %v365
    %v1132 = vunpack.c.h.b16 %v365
    %v1133 = vunpack.c.l.b16 %v366
    %v1134 = vunpack.c.h.b16 %v366
    %v1135 = vpack.c.b16 %v627, %v623
    %v1136 = vpack.c.b16 %v628, %v624
    %v1137 = vpack.c.b16 %v629, %v625
    %v1138 = vpack.c.b16 %v630, %v626
    %v1139 = vpack.c.b16 %v635, %v631
    %v1140 = vpack.c.b16 %v636, %v632
    %v1141 = vpack.c.b16 %v637, %v633
    %v1142 = vpack.c.b16 %v638, %v634
    %v1143 = vpack.c.b16 %v643, %v639
    %v1144 = vpack.c.b16 %v644, %v640
    %v1145 = vpack.c.b16 %v645, %v641
    %v1146 = vpack.c.b16 %v646, %v642
    %v1147 = vpack.c.b16 %v651, %v647
    %v1148 = vpack.c.b16 %v652, %v648
    %v1149 = vpack.c.b16 %v653, %v649
    %v1150 = vpack.c.b16 %v654, %v650
    %v1151 = vpack.c.b16 %v659, %v655
    %v1152 = vpack.c.b16 %v660, %v656
    %v1153 = vpack.c.b16 %v661, %v657
    %v1154 = vpack.c.b16 %v662, %v658
    %v1155 = vpack.c.b16 %v667, %v663
    %v1156 = vpack.c.b16 %v668, %v664
    %v1157 = vpack.c.b16 %v669, %v665
    %v1158 = vpack.c.b16 %v670, %v666
    %v1159 = vpack.c.b16 %v675, %v671
    %v1160 = vpack.c.b16 %v676, %v672
    %v1161 = vpack.c.b16 %v677, %v673
    %v1162 = vpack.c.b16 %v678, %v674
    %v1163 = vpack.c.b16 %v683, %v679
    %v1164 = vpack.c.b16 %v684, %v680
    %v1165 = vpack.c.b16 %v685, %v681
    %v1166 = vpack.c.b16 %v686, %v682
    %v1167 = vpack.c.b16 %v691, %v687
    %v1168 = vpack.c.b16 %v692, %v688
    %v1169 = vpack.c.b16 %v693, %v689
    %v1170 = vpack.c.b16 %v694, %v690
    %v1171 = vpack.c.b16 %v699, %v695
    %v1172 = vpack.c.b16 %v700, %v696
    %v1173 = vpack.c.b16 %v701, %v697
    %v1174 = vpack.c.b16 %v702, %v698
    %v1175 = vpack.c.b16 %v707, %v703
    %v1176 = vpack.c.b16 %v708, %v704
    %v1177 = vpack.c.b16 %v709, %v705
    %v1178 = vpack.c.b16 %v710, %v706
    %v1179 = vpack.c.b16 %v715, %v711
    %v1180 = vpack.c.b16 %v716, %v712
    %v1181 = vpack.c.b16 %v717, %v713
    %v1182 = vpack.c.b16 %v718, %v714
    %v1183 = vpack.c.b16 %v723, %v719
    %v1184 = vpack.c.b16 %v724, %v720
    %v1185 = vpack.c.b16 %v725, %v721
    %v1186 = vpack.c.b16 %v726, %v722
    %v1187 = vpack.c.b16 %v731, %v727
    %v1188 = vpack.c.b16 %v732, %v728
    %v1189 = vpack.c.b16 %v733, %v729
    %v1190 = vpack.c.b16 %v734, %v730
    %v1191 = vpack.c.b16 %v739, %v735
    %v1192 = vpack.c.b16 %v740, %v736
    %v1193 = vpack.c.b16 %v741, %v737
    %v1194 = vpack.c.b16 %v742, %v738
    %v1195 = vpack.c.b16 %v747, %v743
    %v1196 = vpack.c.b16 %v748, %v744
    %v1197 = vpack.c.b16 %v749, %v745
    %v1198 = vpack.c.b16 %v750, %v746
    %v1199 = vpack.c.b16 %v755, %v751
    %v1200 = vpack.c.b16 %v756, %v752
    %v1201 = vpack.c.b16 %v757, %v753
    %v1202 = vpack.c.b16 %v758, %v754
    %v1203 = vpack.c.b16 %v763, %v759
    %v1204 = vpack.c.b16 %v764, %v760
    %v1205 = vpack.c.b16 %v765, %v761
    %v1206 = vpack.c.b16 %v766, %v762
    %v1207 = vpack.c.b16 %v771, %v767
    %v1208 = vpack.c.b16 %v772, %v768
    %v1209 = vpack.c.b16 %v773, %v769
    %v1210 = vpack.c.b16 %v774, %v770
    %v1211 = vpack.c.b16 %v779, %v775
    %v1212 = vpack.c.b16 %v780, %v776
    %v1213 = vpack.c.b16 %v781, %v777
    %v1214 = vpack.c.b16 %v782, %v778
    %v1215 = vpack.c.b16 %v787, %v783
    %v1216 = vpack.c.b16 %v788, %v784
    %v1217 = vpack.c.b16 %v789, %v785
    %v1218 = vpack.c.b16 %v790, %v786
    %v1219 = vpack.c.b16 %v795, %v791
    %v1220 = vpack.c.b16 %v796, %v792
    %v1221 = vpack.c.b16 %v797, %v793
    %v1222 = vpack.c.b16 %v798, %v794
    %v1223 = vpack.c.b16 %v803, %v799
    %v1224 = vpack.c.b16 %v804, %v800
    %v1225 = vpack.c.b16 %v805, %v801
    %v1226 = vpack.c.b16 %v806, %v802
    %v1227 = vpack.c.b16 %v811, %v807
    %v1228 = vpack.c.b16 %v812, %v808
    %v1229 = vpack.c.b16 %v813, %v809
    %v1230 = vpack.c.b16 %v814, %v810
    %v1231 = vpack.c.b16 %v819, %v815
    %v1232 = vpack.c.b16 %v820, %v816
    %v1233 = vpack.c.b16 %v821, %v817
    %v1234 = vpack.c.b16 %v822, %v818
    %v1235 = vpack.c.b16 %v827, %v823
    %v1236 = vpack.c.b16 %v828, %v824
    %v1237 = vpack.c.b16 %v829, %v825
    %v1238 = vpack.c.b16 %v830, %v826
    %v1239 = vpack.c.b16 %v835, %v831
    %v1240 = vpack.c.b16 %v836, %v832
    %v1241 = vpack.c.b16 %v837, %v833
    %v1242 = vpack.c.b16 %v838, %v834
    %v1243 = vpack.c.b16 %v843, %v839
    %v1244 = vpack.c.b16 %v844, %v840
    %v1245 = vpack.c.b16 %v845, %v841
    %v1246 = vpack.c.b16 %v846, %v842
    %v1247 = vpack.c.b16 %v851, %v847
    %v1248 = vpack.c.b16 %v852, %v848
    %v1249 = vpack.c.b16 %v853, %v849
    %v1250 = vpack.c.b16 %v854, %v850
    %v1251 = vpack.c.b16 %v859, %v855
    %v1252 = vpack.c.b16 %v860, %v856
    %v1253 = vpack.c.b16 %v861, %v857
    %v1254 = vpack.c.b16 %v862, %v858
    %v1255 = vpack.c.b16 %v867, %v863
    %v1256 = vpack.c.b16 %v868, %v864
    %v1257 = vpack.c.b16 %v869, %v865
    %v1258 = vpack.c.b16 %v870, %v866
    %v1259 = vpack.c.b16 %v875, %v871
    %v1260 = vpack.c.b16 %v876, %v872
    %v1261 = vpack.c.b16 %v877, %v873
    %v1262 = vpack.c.b16 %v878, %v874
    %v1263 = vpack.c.b16 %v883, %v879
    %v1264 = vpack.c.b16 %v884, %v880
    %v1265 = vpack.c.b16 %v885, %v881
    %v1266 = vpack.c.b16 %v886, %v882
    %v1267 = vpack.c.b16 %v891, %v887
    %v1268 = vpack.c.b16 %v892, %v888
    %v1269 = vpack.c.b16 %v893, %v889
    %v1270 = vpack.c.b16 %v894, %v890
    %v1271 = vpack.c.b16 %v899, %v895
    %v1272 = vpack.c.b16 %v900, %v896
    %v1273 = vpack.c.b16 %v901, %v897
    %v1274 = vpack.c.b16 %v902, %v898
    %v1275 = vpack.c.b16 %v907, %v903
    %v1276 = vpack.c.b16 %v908, %v904
    %v1277 = vpack.c.b16 %v909, %v905
    %v1278 = vpack.c.b16 %v910, %v906
    %v1279 = vpack.c.b16 %v915, %v911
    %v1280 = vpack.c.b16 %v916, %v912
    %v1281 = vpack.c.b16 %v917, %v913
    %v1282 = vpack.c.b16 %v918, %v914
    %v1283 = vpack.c.b16 %v923, %v919
    %v1284 = vpack.c.b16 %v924, %v920
    %v1285 = vpack.c.b16 %v925, %v921
    %v1286 = vpack.c.b16 %v926, %v922
    %v1287 = vpack.c.b16 %v931, %v927
    %v1288 = vpack.c.b16 %v932, %v928
    %v1289 = vpack.c.b16 %v933, %v929
    %v1290 = vpack.c.b16 %v934, %v930
    %v1291 = vpack.c.b16 %v939, %v935
    %v1292 = vpack.c.b16 %v940, %v936
    %v1293 = vpack.c.b16 %v941, %v937
    %v1294 = vpack.c.b16 %v942, %v938
    %v1295 = vpack.c.b16 %v947, %v943
    %v1296 = vpack.c.b16 %v948, %v944
    %v1297 = vpack.c.b16 %v949, %v945
    %v1298 = vpack.c.b16 %v950, %v946
    %v1299 = vpack.c.b16 %v955, %v951
    %v1300 = vpack.c.b16 %v956, %v952
    %v1301 = vpack.c.b16 %v957, %v953
    %v1302 = vpack.c.b16 %v958, %v954
    %v1303 = vpack.c.b16 %v963, %v959
    %v1304 = vpack.c.b16 %v964, %v960
    %v1305 = vpack.c.b16 %v965, %v961
    %v1306 = vpack.c.b16 %v966, %v962
    %v1307 = vpack.c.b16 %v971, %v967
    %v1308 = vpack.c.b16 %v972, %v968
    %v1309 = vpack.c.b16 %v973, %v969
    %v1310 = vpack.c.b16 %v974, %v970
    %v1311 = vpack.c.b16 %v979, %v975
    %v1312 = vpack.c.b16 %v980, %v976
    %v1313 = vpack.c.b16 %v981, %v977
    %v1314 = vpack.c.b16 %v982, %v978
    %v1315 = vpack.c.b16 %v987, %v983
    %v1316 = vpack.c.b16 %v988, %v984
    %v1317 = vpack.c.b16 %v989, %v985
    %v1318 = vpack.c.b16 %v990, %v986
    %v1319 = vpack.c.b16 %v995, %v991
    %v1320 = vpack.c.b16 %v996, %v992
    %v1321 = vpack.c.b16 %v997, %v993
    %v1322 = vpack.c.b16 %v998, %v994
    %v1323 = vpack.c.b16 %v1003, %v999
    %v1324 = vpack.c.b16 %v1004, %v1000
    %v1325 = vpack.c.b16 %v1005, %v1001
    %v1326 = vpack.c.b16 %v1006, %v1002
    %v1327 = vpack.c.b16 %v1011, %v1007
    %v1328 = vpack.c.b16 %v1012, %v1008
    %v1329 = vpack.c.b16 %v1013, %v1009
    %v1330 = vpack.c.b16 %v1014, %v1010
    %v1331 = vpack.c.b16 %v1019, %v1015
    %v1332 = vpack.c.b16 %v1020, %v1016
    %v1333 = vpack.c.b16 %v1021, %v1017
    %v1334 = vpack.c.b16 %v1022, %v1018
    %v1335 = vpack.c.b16 %v1027, %v1023
    %v1336 = vpack.c.b16 %v1028, %v1024
    %v1337 = vpack.c.b16 %v1029, %v1025
    %v1338 = vpack.c.b16 %v1030, %v1026
    %v1339 = vpack.c.b16 %v1035, %v1031
    %v1340 = vpack.c.b16 %v1036, %v1032
    %v1341 = vpack.c.b16 %v1037, %v1033
    %v1342 = vpack.c.b16 %v1038, %v1034
    %v1343 = vpack.c.b16 %v1043, %v1039
    %v1344 = vpack.c.b16 %v1044, %v1040
    %v1345 = vpack.c.b16 %v1045, %v1041
    %v1346 = vpack.c.b16 %v1046, %v1042
    %v1347 = vpack.c.b16 %v1051, %v1047
    %v1348 = vpack.c.b16 %v1052, %v1048
    %v1349 = vpack.c.b16 %v1053, %v1049
    %v1350 = vpack.c.b16 %v1054, %v1050
    %v1351 = vpack.c.b16 %v1059, %v1055
    %v1352 = vpack.c.b16 %v1060, %v1056
    %v1353 = vpack.c.b16 %v1061, %v1057
    %v1354 = vpack.c.b16 %v1062, %v1058
    %v1355 = vpack.c.b16 %v1067, %v1063
    %v1356 = vpack.c.b16 %v1068, %v1064
    %v1357 = vpack.c.b16 %v1069, %v1065
    %v1358 = vpack.c.b16 %v1070, %v1066
    %v1359 = vpack.c.b16 %v1075, %v1071
    %v1360 = vpack.c.b16 %v1076, %v1072
    %v1361 = vpack.c.b16 %v1077, %v1073
    %v1362 = vpack.c.b16 %v1078, %v1074
    %v1363 = vpack.c.b16 %v1083, %v1079
    %v1364 = vpack.c.b16 %v1084, %v1080
    %v1365 = vpack.c.b16 %v1085, %v1081
    %v1366 = vpack.c.b16 %v1086, %v1082
    %v1367 = vpack.c.b16 %v1091, %v1087
    %v1368 = vpack.c.b16 %v1092, %v1088
    %v1369 = vpack.c.b16 %v1093, %v1089
    %v1370 = vpack.c.b16 %v1094, %v1090
    %v1371 = vpack.c.b16 %v1099, %v1095
    %v1372 = vpack.c.b16 %v1100, %v1096
    %v1373 = vpack.c.b16 %v1101, %v1097
    %v1374 = vpack.c.b16 %v1102, %v1098
    %v1375 = vpack.c.b16 %v1107, %v1103
    %v1376 = vpack.c.b16 %v1108, %v1104
    %v1377 = vpack.c.b16 %v1109, %v1105
    %v1378 = vpack.c.b16 %v1110, %v1106
    %v1379 = vpack.c.b16 %v1115, %v1111
    %v1380 = vpack.c.b16 %v1116, %v1112
    %v1381 = vpack.c.b16 %v1117, %v1113
    %v1382 = vpack.c.b16 %v1118, %v1114
    %v1383 = vpack.c.b16 %v1123, %v1119
    %v1384 = vpack.c.b16 %v1124, %v1120
    %v1385 = vpack.c.b16 %v1125, %v1121
    %v1386 = vpack.c.b16 %v1126, %v1122
    %v1387 = vpack.c.b16 %v1131, %v1127
    %v1388 = vpack.c.b16 %v1132, %v1128
    %v1389 = vpack.c.b16 %v1133, %v1129
    %v1390 = vpack.c.b16 %v1134, %v1130
    %v1648 = vlaneseq
    %v1649 = vshrl.u32 %v1648, 7
    %v1650 = vsub.s32 0, %v1649
    %v1651 = vrot.slane %v58, %v1650
    %v1652 = vlaneseq
    %v1653 = vshrl.u32 %v1652, 7
    %v1654 = vsub.s32 1, %v1653
    %v1655 = vrot.slane %v58, %v1654
    %v1656 = vlaneseq
    %v1657 = vshrl.u32 %v1656, 7
    %v1658 = vsub.s32 2, %v1657
    %v1659 = vrot.slane %v58, %v1658
    %v1660 = vlaneseq
    %v1661 = vshrl.u32 %v1660, 7
    %v1662 = vsub.s32 3, %v1661
    %v1663 = vrot.slane %v58, %v1662
    %1668 = vmatprep.subr.bf16.mxu0 %v1136
    %1669 = vmatpush1.bf16.msra.mxu0 %v1135
    %1670 = vmatprep.subr.bf16.mxu0 %v1140
    %1671 = vmatpush1.bf16.msra.mxu0 %v1139
    %1672 = vmatprep.subr.bf16.mxu0 %v1144
    %1673 = vmatpush1.bf16.msra.mxu0 %v1143
    %1674 = vmatprep.subr.bf16.mxu0 %v1148
    %1675 = vmatpush1.bf16.msra.mxu0 %v1147
    %1676 = vmatprep.subr.bf16.mxu0 %v1152
    %1677 = vmatpush1.bf16.msra.mxu0 %v1151
    %1678 = vmatprep.subr.bf16.mxu0 %v1156
    %1679 = vmatpush1.bf16.msra.mxu0 %v1155
    %1680 = vmatprep.subr.bf16.mxu0 %v1160
    %1681 = vmatpush1.bf16.msra.mxu0 %v1159
    %1682 = vmatprep.subr.bf16.mxu0 %v1164
    %1683 = vmatpush1.bf16.msra.mxu0 %v1163
    %1684 = vmatprep.subr.bf16.mxu0 %v1168
    %1685 = vmatpush1.bf16.msra.mxu0 %v1167
    %1686 = vmatprep.subr.bf16.mxu0 %v1172
    %1687 = vmatpush1.bf16.msra.mxu0 %v1171
    %1688 = vmatprep.subr.bf16.mxu0 %v1176
    %1689 = vmatpush1.bf16.msra.mxu0 %v1175
    %1690 = vmatprep.subr.bf16.mxu0 %v1180
    %1691 = vmatpush1.bf16.msra.mxu0 %v1179
    %1692 = vmatprep.subr.bf16.mxu0 %v1184
    %1693 = vmatpush1.bf16.msra.mxu0 %v1183
    %1694 = vmatprep.subr.bf16.mxu0 %v1188
    %1695 = vmatpush1.bf16.msra.mxu0 %v1187
    %1696 = vmatprep.subr.bf16.mxu0 %v1192
    %1697 = vmatpush1.bf16.msra.mxu0 %v1191
    %1698 = vmatprep.subr.bf16.mxu0 %v1196
    %1699 = vmatpush1.bf16.msra.mxu0 %v1195
    %1700 = vmatprep.mubr.bf16.mxu0 %v104
    %1701 = vmatmul.mubr.bf16.gmra.mrb[0].mxu0 %v103
    %v1702 = vpop.f32.mrb[0].mxu0
    %v1703 = vadd.f32 %v1651, %v1702
    %v1704 = vpop.f32.mrb[0].mxu0
    %v1705 = vadd.f32 %v1655, %v1704
    %v1706 = vpop.f32.mrb[0].mxu0
    %v1707 = vpop.f32.mrb[0].mxu0
    %1708 = vdwg.mxu0
    %1709 = vmatprep.subr.bf16.mxu0 %v1200
    %1710 = vmatpush1.bf16.msra.mxu0 %v1199
    %1711 = vmatprep.subr.bf16.mxu0 %v1204
    %1712 = vmatpush1.bf16.msra.mxu0 %v1203
    %1713 = vmatprep.subr.bf16.mxu0 %v1208
    %1714 = vmatpush1.bf16.msra.mxu0 %v1207
    %1715 = vmatprep.subr.bf16.mxu0 %v1212
    %1716 = vmatpush1.bf16.msra.mxu0 %v1211
    %1717 = vmatprep.subr.bf16.mxu0 %v1216
    %1718 = vmatpush1.bf16.msra.mxu0 %v1215
    %1719 = vmatprep.subr.bf16.mxu0 %v1220
    %1720 = vmatpush1.bf16.msra.mxu0 %v1219
    %1721 = vmatprep.subr.bf16.mxu0 %v1224
    %1722 = vmatpush1.bf16.msra.mxu0 %v1223
    %1723 = vmatprep.subr.bf16.mxu0 %v1228
    %1724 = vmatpush1.bf16.msra.mxu0 %v1227
    %1725 = vmatprep.subr.bf16.mxu0 %v1232
    %1726 = vmatpush1.bf16.msra.mxu0 %v1231
    %1727 = vmatprep.subr.bf16.mxu0 %v1236
    %1728 = vmatpush1.bf16.msra.mxu0 %v1235
    %1729 = vmatprep.subr.bf16.mxu0 %v1240
    %1730 = vmatpush1.bf16.msra.mxu0 %v1239
    %1731 = vmatprep.subr.bf16.mxu0 %v1244
    %1732 = vmatpush1.bf16.msra.mxu0 %v1243
    %1733 = vmatprep.subr.bf16.mxu0 %v1248
    %1734 = vmatpush1.bf16.msra.mxu0 %v1247
    %1735 = vmatprep.subr.bf16.mxu0 %v1252
    %1736 = vmatpush1.bf16.msra.mxu0 %v1251
    %1737 = vmatprep.subr.bf16.mxu0 %v1256
    %1738 = vmatpush1.bf16.msra.mxu0 %v1255
    %1739 = vmatprep.subr.bf16.mxu0 %v1260
    %1740 = vmatpush1.bf16.msra.mxu0 %v1259
    %1741 = vmatprep.mubr.bf16.mxu0 %v106
    %1742 = vmatmul.mubr.bf16.gmra.mrb[0].mxu0 %v105
    %v1743 = vpop.f32.mrb[0].mxu0
    %v1744 = vadd.f32 %v1703, %v1743
    %v1745 = vpop.f32.mrb[0].mxu0
    %v1746 = vadd.f32 %v1705, %v1745
    %v1747 = vpop.f32.mrb[0].mxu0
    %v1748 = vpop.f32.mrb[0].mxu0
    %1749 = vdwg.mxu0
    %1750 = vmatprep.subr.bf16.mxu0 %v1264
    %1751 = vmatpush1.bf16.msra.mxu0 %v1263
    %1752 = vmatprep.subr.bf16.mxu0 %v1268
    %1753 = vmatpush1.bf16.msra.mxu0 %v1267
    %1754 = vmatprep.subr.bf16.mxu0 %v1272
    %1755 = vmatpush1.bf16.msra.mxu0 %v1271
    %1756 = vmatprep.subr.bf16.mxu0 %v1276
    %1757 = vmatpush1.bf16.msra.mxu0 %v1275
    %1758 = vmatprep.subr.bf16.mxu0 %v1280
    %1759 = vmatpush1.bf16.msra.mxu0 %v1279
    %1760 = vmatprep.subr.bf16.mxu0 %v1284
    %1761 = vmatpush1.bf16.msra.mxu0 %v1283
    %1762 = vmatprep.subr.bf16.mxu0 %v1288
    %1763 = vmatpush1.bf16.msra.mxu0 %v1287
    %1764 = vmatprep.subr.bf16.mxu0 %v1292
    %1765 = vmatpush1.bf16.msra.mxu0 %v1291
    %1766 = vmatprep.subr.bf16.mxu0 %v1296
    %1767 = vmatpush1.bf16.msra.mxu0 %v1295
    %1768 = vmatprep.subr.bf16.mxu0 %v1300
    %1769 = vmatpush1.bf16.msra.mxu0 %v1299
    %1770 = vmatprep.subr.bf16.mxu0 %v1304
    %1771 = vmatpush1.bf16.msra.mxu0 %v1303
    %1772 = vmatprep.subr.bf16.mxu0 %v1308
    %1773 = vmatpush1.bf16.msra.mxu0 %v1307
    %1774 = vmatprep.subr.bf16.mxu0 %v1312
    %1775 = vmatpush1.bf16.msra.mxu0 %v1311
    %1776 = vmatprep.subr.bf16.mxu0 %v1316
    %1777 = vmatpush1.bf16.msra.mxu0 %v1315
    %1778 = vmatprep.subr.bf16.mxu0 %v1320
    %1779 = vmatpush1.bf16.msra.mxu0 %v1319
    %1780 = vmatprep.subr.bf16.mxu0 %v1324
    %1781 = vmatpush1.bf16.msra.mxu0 %v1323
    %1782 = vmatprep.mubr.bf16.mxu0 %v108
    %1783 = vmatmul.mubr.bf16.gmra.mrb[0].mxu0 %v107
    %v1784 = vpop.f32.mrb[0].mxu0
    %v1785 = vadd.f32 %v1744, %v1784
    %v1786 = vpop.f32.mrb[0].mxu0
    %v1787 = vadd.f32 %v1746, %v1786
    %v1788 = vpop.f32.mrb[0].mxu0
    %v1789 = vpop.f32.mrb[0].mxu0
    %1790 = vdwg.mxu0
    %1791 = vmatprep.subr.bf16.mxu0 %v1328
    %1792 = vmatpush1.bf16.msra.mxu0 %v1327
    %1793 = vmatprep.subr.bf16.mxu0 %v1332
    %1794 = vmatpush1.bf16.msra.mxu0 %v1331
    %1795 = vmatprep.subr.bf16.mxu0 %v1336
    %1796 = vmatpush1.bf16.msra.mxu0 %v1335
    %1797 = vmatprep.subr.bf16.mxu0 %v1340
    %1798 = vmatpush1.bf16.msra.mxu0 %v1339
    %1799 = vmatprep.subr.bf16.mxu0 %v1344
    %1800 = vmatpush1.bf16.msra.mxu0 %v1343
    %1801 = vmatprep.subr.bf16.mxu0 %v1348
    %1802 = vmatpush1.bf16.msra.mxu0 %v1347
    %1803 = vmatprep.subr.bf16.mxu0 %v1352
    %1804 = vmatpush1.bf16.msra.mxu0 %v1351
    %1805 = vmatprep.subr.bf16.mxu0 %v1356
    %1806 = vmatpush1.bf16.msra.mxu0 %v1355
    %1807 = vmatprep.subr.bf16.mxu0 %v1360
    %1808 = vmatpush1.bf16.msra.mxu0 %v1359
    %1809 = vmatprep.subr.bf16.mxu0 %v1364
    %1810 = vmatpush1.bf16.msra.mxu0 %v1363
    %1811 = vmatprep.subr.bf16.mxu0 %v1368
    %1812 = vmatpush1.bf16.msra.mxu0 %v1367
    %1813 = vmatprep.subr.bf16.mxu0 %v1372
    %1814 = vmatpush1.bf16.msra.mxu0 %v1371
    %1815 = vmatprep.subr.bf16.mxu0 %v1376
    %1816 = vmatpush1.bf16.msra.mxu0 %v1375
    %1817 = vmatprep.subr.bf16.mxu0 %v1380
    %1818 = vmatpush1.bf16.msra.mxu0 %v1379
    %1819 = vmatprep.subr.bf16.mxu0 %v1384
    %1820 = vmatpush1.bf16.msra.mxu0 %v1383
    %1821 = vmatprep.subr.bf16.mxu0 %v1388
    %1822 = vmatpush1.bf16.msra.mxu0 %v1387
    %1823 = vmatprep.mubr.bf16.mxu0 %v110
    %1824 = vmatmul.mubr.bf16.gmra.mrb[0].mxu0 %v109
    %v1825 = vpop.f32.mrb[0].mxu0
    %v1826 = vadd.f32 %v1785, %v1825
    %v1827 = vpop.f32.mrb[0].mxu0
    %v1828 = vadd.f32 %v1787, %v1827
    %v1829 = vpop.f32.mrb[0].mxu0
    %v1830 = vpop.f32.mrb[0].mxu0
    %1831 = vdwg.mxu0
    %1832 = vmatprep.subr.bf16.mxu0 %v1138
    %1833 = vmatpush1.bf16.msra.mxu0 %v1137
    %1834 = vmatprep.subr.bf16.mxu0 %v1142
    %1835 = vmatpush1.bf16.msra.mxu0 %v1141
    %1836 = vmatprep.subr.bf16.mxu0 %v1146
    %1837 = vmatpush1.bf16.msra.mxu0 %v1145
    %1838 = vmatprep.subr.bf16.mxu0 %v1150
    %1839 = vmatpush1.bf16.msra.mxu0 %v1149
    %1840 = vmatprep.subr.bf16.mxu0 %v1154
    %1841 = vmatpush1.bf16.msra.mxu0 %v1153
    %1842 = vmatprep.subr.bf16.mxu0 %v1158
    %1843 = vmatpush1.bf16.msra.mxu0 %v1157
    %1844 = vmatprep.subr.bf16.mxu0 %v1162
    %1845 = vmatpush1.bf16.msra.mxu0 %v1161
    %1846 = vmatprep.subr.bf16.mxu0 %v1166
    %1847 = vmatpush1.bf16.msra.mxu0 %v1165
    %1848 = vmatprep.subr.bf16.mxu0 %v1170
    %1849 = vmatpush1.bf16.msra.mxu0 %v1169
    %1850 = vmatprep.subr.bf16.mxu0 %v1174
    %1851 = vmatpush1.bf16.msra.mxu0 %v1173
    %1852 = vmatprep.subr.bf16.mxu0 %v1178
    %1853 = vmatpush1.bf16.msra.mxu0 %v1177
    %1854 = vmatprep.subr.bf16.mxu0 %v1182
    %1855 = vmatpush1.bf16.msra.mxu0 %v1181
    %1856 = vmatprep.subr.bf16.mxu0 %v1186
    %1857 = vmatpush1.bf16.msra.mxu0 %v1185
    %1858 = vmatprep.subr.bf16.mxu0 %v1190
    %1859 = vmatpush1.bf16.msra.mxu0 %v1189
    %1860 = vmatprep.subr.bf16.mxu0 %v1194
    %1861 = vmatpush1.bf16.msra.mxu0 %v1193
    %1862 = vmatprep.subr.bf16.mxu0 %v1198
    %1863 = vmatpush1.bf16.msra.mxu0 %v1197
    %1864 = vmatprep.mubr.bf16.mxu0 %v104
    %1865 = vmatmul.mubr.bf16.gmra.mrb[0].mxu0 %v103
    %v1866 = vpop.f32.mrb[0].mxu0
    %v1867 = vadd.f32 %v1659, %v1866
    %v1868 = vpop.f32.mrb[0].mxu0
    %v1869 = vadd.f32 %v1663, %v1868
    %v1870 = vpop.f32.mrb[0].mxu0
    %v1871 = vpop.f32.mrb[0].mxu0
    %1872 = vdwg.mxu0
    %1873 = vmatprep.subr.bf16.mxu0 %v1202
    %1874 = vmatpush1.bf16.msra.mxu0 %v1201
    %1875 = vmatprep.subr.bf16.mxu0 %v1206
    %1876 = vmatpush1.bf16.msra.mxu0 %v1205
    %1877 = vmatprep.subr.bf16.mxu0 %v1210
    %1878 = vmatpush1.bf16.msra.mxu0 %v1209
    %1879 = vmatprep.subr.bf16.mxu0 %v1214
    %1880 = vmatpush1.bf16.msra.mxu0 %v1213
    %1881 = vmatprep.subr.bf16.mxu0 %v1218
    %1882 = vmatpush1.bf16.msra.mxu0 %v1217
    %1883 = vmatprep.subr.bf16.mxu0 %v1222
    %1884 = vmatpush1.bf16.msra.mxu0 %v1221
    %1885 = vmatprep.subr.bf16.mxu0 %v1226
    %1886 = vmatpush1.bf16.msra.mxu0 %v1225
    %1887 = vmatprep.subr.bf16.mxu0 %v1230
    %1888 = vmatpush1.bf16.msra.mxu0 %v1229
    %1889 = vmatprep.subr.bf16.mxu0 %v1234
    %1890 = vmatpush1.bf16.msra.mxu0 %v1233
    %1891 = vmatprep.subr.bf16.mxu0 %v1238
    %1892 = vmatpush1.bf16.msra.mxu0 %v1237
    %1893 = vmatprep.subr.bf16.mxu0 %v1242
    %1894 = vmatpush1.bf16.msra.mxu0 %v1241
    %1895 = vmatprep.subr.bf16.mxu0 %v1246
    %1896 = vmatpush1.bf16.msra.mxu0 %v1245
    %1897 = vmatprep.subr.bf16.mxu0 %v1250
    %1898 = vmatpush1.bf16.msra.mxu0 %v1249
    %1899 = vmatprep.subr.bf16.mxu0 %v1254
    %1900 = vmatpush1.bf16.msra.mxu0 %v1253
    %1901 = vmatprep.subr.bf16.mxu0 %v1258
    %1902 = vmatpush1.bf16.msra.mxu0 %v1257
    %1903 = vmatprep.subr.bf16.mxu0 %v1262
    %1904 = vmatpush1.bf16.msra.mxu0 %v1261
    %1905 = vmatprep.mubr.bf16.mxu0 %v106
    %1906 = vmatmul.mubr.bf16.gmra.mrb[0].mxu0 %v105
    %v1907 = vpop.f32.mrb[0].mxu0
    %v1908 = vadd.f32 %v1867, %v1907
    %v1909 = vpop.f32.mrb[0].mxu0
    %v1910 = vadd.f32 %v1869, %v1909
    %v1911 = vpop.f32.mrb[0].mxu0
    %v1912 = vpop.f32.mrb[0].mxu0
    %1913 = vdwg.mxu0
    %1914 = vmatprep.subr.bf16.mxu0 %v1266
    %1915 = vmatpush1.bf16.msra.mxu0 %v1265
    %1916 = vmatprep.subr.bf16.mxu0 %v1270
    %1917 = vmatpush1.bf16.msra.mxu0 %v1269
    %1918 = vmatprep.subr.bf16.mxu0 %v1274
    %1919 = vmatpush1.bf16.msra.mxu0 %v1273
    %1920 = vmatprep.subr.bf16.mxu0 %v1278
    %1921 = vmatpush1.bf16.msra.mxu0 %v1277
    %1922 = vmatprep.subr.bf16.mxu0 %v1282
    %1923 = vmatpush1.bf16.msra.mxu0 %v1281
    %1924 = vmatprep.subr.bf16.mxu0 %v1286
    %1925 = vmatpush1.bf16.msra.mxu0 %v1285
    %1926 = vmatprep.subr.bf16.mxu0 %v1290
    %1927 = vmatpush1.bf16.msra.mxu0 %v1289
    %1928 = vmatprep.subr.bf16.mxu0 %v1294
    %1929 = vmatpush1.bf16.msra.mxu0 %v1293
    %1930 = vmatprep.subr.bf16.mxu0 %v1298
    %1931 = vmatpush1.bf16.msra.mxu0 %v1297
    %1932 = vmatprep.subr.bf16.mxu0 %v1302
    %1933 = vmatpush1.bf16.msra.mxu0 %v1301
    %1934 = vmatprep.subr.bf16.mxu0 %v1306
    %1935 = vmatpush1.bf16.msra.mxu0 %v1305
    %1936 = vmatprep.subr.bf16.mxu0 %v1310
    %1937 = vmatpush1.bf16.msra.mxu0 %v1309
    %1938 = vmatprep.subr.bf16.mxu0 %v1314
    %1939 = vmatpush1.bf16.msra.mxu0 %v1313
    %1940 = vmatprep.subr.bf16.mxu0 %v1318
    %1941 = vmatpush1.bf16.msra.mxu0 %v1317
    %1942 = vmatprep.subr.bf16.mxu0 %v1322
    %1943 = vmatpush1.bf16.msra.mxu0 %v1321
    %1944 = vmatprep.subr.bf16.mxu0 %v1326
    %1945 = vmatpush1.bf16.msra.mxu0 %v1325
    %1946 = vmatprep.mubr.bf16.mxu0 %v108
    %1947 = vmatmul.mubr.bf16.gmra.mrb[0].mxu0 %v107
    %v1948 = vpop.f32.mrb[0].mxu0
    %v1949 = vadd.f32 %v1908, %v1948
    %v1950 = vpop.f32.mrb[0].mxu0
    %v1951 = vadd.f32 %v1910, %v1950
    %v1952 = vpop.f32.mrb[0].mxu0
    %v1953 = vpop.f32.mrb[0].mxu0
    %1954 = vdwg.mxu0
    %1955 = vmatprep.subr.bf16.mxu0 %v1330
    %1956 = vmatpush1.bf16.msra.mxu0 %v1329
    %1957 = vmatprep.subr.bf16.mxu0 %v1334
    %1958 = vmatpush1.bf16.msra.mxu0 %v1333
    %1959 = vmatprep.subr.bf16.mxu0 %v1338
    %1960 = vmatpush1.bf16.msra.mxu0 %v1337
    %1961 = vmatprep.subr.bf16.mxu0 %v1342
    %1962 = vmatpush1.bf16.msra.mxu0 %v1341
    %1963 = vmatprep.subr.bf16.mxu0 %v1346
    %1964 = vmatpush1.bf16.msra.mxu0 %v1345
    %1965 = vmatprep.subr.bf16.mxu0 %v1350
    %1966 = vmatpush1.bf16.msra.mxu0 %v1349
    %1967 = vmatprep.subr.bf16.mxu0 %v1354
    %1968 = vmatpush1.bf16.msra.mxu0 %v1353
    %1969 = vmatprep.subr.bf16.mxu0 %v1358
    %1970 = vmatpush1.bf16.msra.mxu0 %v1357
    %1971 = vmatprep.subr.bf16.mxu0 %v1362
    %1972 = vmatpush1.bf16.msra.mxu0 %v1361
    %1973 = vmatprep.subr.bf16.mxu0 %v1366
    %1974 = vmatpush1.bf16.msra.mxu0 %v1365
    %1975 = vmatprep.subr.bf16.mxu0 %v1370
    %1976 = vmatpush1.bf16.msra.mxu0 %v1369
    %1977 = vmatprep.subr.bf16.mxu0 %v1374
    %1978 = vmatpush1.bf16.msra.mxu0 %v1373
    %1979 = vmatprep.subr.bf16.mxu0 %v1378
    %1980 = vmatpush1.bf16.msra.mxu0 %v1377
    %1981 = vmatprep.subr.bf16.mxu0 %v1382
    %1982 = vmatpush1.bf16.msra.mxu0 %v1381
    %1983 = vmatprep.subr.bf16.mxu0 %v1386
    %1984 = vmatpush1.bf16.msra.mxu0 %v1385
    %1985 = vmatprep.subr.bf16.mxu0 %v1390
    %1986 = vmatpush1.bf16.msra.mxu0 %v1389
    %1987 = vmatprep.mubr.bf16.mxu0 %v110
    %1988 = vmatmul.mubr.bf16.gmra.mrb[0].mxu0 %v109
    %v1989 = vpop.f32.mrb[0].mxu0
    %v1990 = vadd.f32 %v1949, %v1989
    %v1991 = vpop.f32.mrb[0].mxu0
    %v1992 = vadd.f32 %v1951, %v1991
    %v1993 = vpop.f32.mrb[0].mxu0
    %v1994 = vpop.f32.mrb[0].mxu0
    %1995 = vdwg.mxu0
    %v1996 = vmax.f32 %v1826, 0.0
    %v1997 = vmax.f32 %v1828, 0.0
    %v1998 = vmax.f32 %v1990, 0.0
    %v1999 = vmax.f32 %v1992, 0.0
    %v2000 = vpack.c.bf16 %v1996, %v1996
    %v2001 = vpack.c.bf16 %v1997, %v1997
    %v2002 = vpack.c.bf16 %v1998, %v1998
    %v2003 = vpack.c.bf16 %v1999, %v1999
    %v2004 = vld [vmem:[#allocation7] sm:$0xf]
    %v2005 = vld [vmem:[#allocation7 + $0x4] sm:$0xf]
    %v2006 = vld [vmem:[#allocation7 + $0x8] sm:$0xf]
    %v2007 = vld [vmem:[#allocation7 + $0xc] sm:$0xf]
    %v2008 = vld [vmem:[#allocation7 + $0x10] sm:$0xf]
    %v2009 = vld [vmem:[#allocation7 + $0x14] sm:$0xf]
    %v2010 = vld [vmem:[#allocation7 + $0x18] sm:$0xf]
    %v2011 = vld [vmem:[#allocation7 + $0x1c] sm:$0xf]
    %v2012 = vld [vmem:[#allocation7 + $0x20] sm:$0xf]
    %v2013 = vld [vmem:[#allocation7 + $0x24] sm:$0xf]
    %v2014 = vld [vmem:[#allocation7 + $0x28] sm:$0xf]
    %v2015 = vld [vmem:[#allocation7 + $0x2c] sm:$0xf]
    %v2016 = vld [vmem:[#allocation7 + $0x30] sm:$0xf]
    %v2017 = vld [vmem:[#allocation7 + $0x34] sm:$0xf]
    %v2018 = vld [vmem:[#allocation7 + $0x38] sm:$0xf]
    %v2019 = vld [vmem:[#allocation7 + $0x3c] sm:$0xf]
    %v2020 = vld [vmem:[#allocation7 + $0x40] sm:$0xf]
    %v2021 = vld [vmem:[#allocation7 + $0x44] sm:$0xf]
    %v2022 = vld [vmem:[#allocation7 + $0x48] sm:$0xf]
    %v2023 = vld [vmem:[#allocation7 + $0x4c] sm:$0xf]
    %v2024 = vld [vmem:[#allocation7 + $0x50] sm:$0xf]
    %v2025 = vld [vmem:[#allocation7 + $0x54] sm:$0xf]
    %v2026 = vld [vmem:[#allocation7 + $0x58] sm:$0xf]
    %v2027 = vld [vmem:[#allocation7 + $0x5c] sm:$0xf]
    %v2028 = vld [vmem:[#allocation7 + $0x60] sm:$0xf]
    %v2029 = vld [vmem:[#allocation7 + $0x64] sm:$0xf]
    %v2030 = vld [vmem:[#allocation7 + $0x68] sm:$0xf]
    %v2031 = vld [vmem:[#allocation7 + $0x6c] sm:$0xf]
    %v2032 = vld [vmem:[#allocation7 + $0x70] sm:$0xf]
    %v2033 = vld [vmem:[#allocation7 + $0x74] sm:$0xf]
    %v2034 = vld [vmem:[#allocation7 + $0x78] sm:$0xf]
    %v2035 = vld [vmem:[#allocation7 + $0x7c] sm:$0xf]
    %v2036 = vld [vmem:[#allocation7 + $0x80] sm:$0xf]
    %v2037 = vld [vmem:[#allocation7 + $0x84] sm:$0xf]
    %v2038 = vld [vmem:[#allocation7 + $0x88] sm:$0xf]
    %v2039 = vld [vmem:[#allocation7 + $0x8c] sm:$0xf]
    %v2040 = vld [vmem:[#allocation7 + $0x90] sm:$0xf]
    %v2041 = vld [vmem:[#allocation7 + $0x94] sm:$0xf]
    %v2042 = vld [vmem:[#allocation7 + $0x98] sm:$0xf]
    %v2043 = vld [vmem:[#allocation7 + $0x9c] sm:$0xf]
    %v2044 = vld [vmem:[#allocation7 + $0xa0] sm:$0xf]
    %v2045 = vld [vmem:[#allocation7 + $0xa4] sm:$0xf]
    %v2046 = vld [vmem:[#allocation7 + $0xa8] sm:$0xf]
    %v2047 = vld [vmem:[#allocation7 + $0xac] sm:$0xf]
    %v2048 = vld [vmem:[#allocation7 + $0xb0] sm:$0xf]
    %v2049 = vld [vmem:[#allocation7 + $0xb4] sm:$0xf]
    %v2050 = vld [vmem:[#allocation7 + $0xb8] sm:$0xf]
    %v2051 = vld [vmem:[#allocation7 + $0xbc] sm:$0xf]
    %v2052 = vld [vmem:[#allocation7 + $0xc0] sm:$0xf]
    %v2053 = vld [vmem:[#allocation7 + $0xc4] sm:$0xf]
    %v2054 = vld [vmem:[#allocation7 + $0xc8] sm:$0xf]
    %v2055 = vld [vmem:[#allocation7 + $0xcc] sm:$0xf]
    %v2056 = vld [vmem:[#allocation7 + $0xd0] sm:$0xf]
    %v2057 = vld [vmem:[#allocation7 + $0xd4] sm:$0xf]
    %v2058 = vld [vmem:[#allocation7 + $0xd8] sm:$0xf]
    %v2059 = vld [vmem:[#allocation7 + $0xdc] sm:$0xf]
    %v2060 = vld [vmem:[#allocation7 + $0xe0] sm:$0xf]
    %v2061 = vld [vmem:[#allocation7 + $0xe4] sm:$0xf]
    %v2062 = vld [vmem:[#allocation7 + $0xe8] sm:$0xf]
    %v2063 = vld [vmem:[#allocation7 + $0xec] sm:$0xf]
    %v2064 = vld [vmem:[#allocation7 + $0xf0] sm:$0xf]
    %v2065 = vld [vmem:[#allocation7 + $0xf4] sm:$0xf]
    %v2066 = vld [vmem:[#allocation7 + $0xf8] sm:$0xf]
    %v2067 = vld [vmem:[#allocation7 + $0xfc] sm:$0xf]
    %v2132 = vunpack.c.l.b16 %v2004
    %v2133 = vunpack.c.l.b16 %v2005
    %v2134 = vunpack.c.l.b16 %v2006
    %v2135 = vunpack.c.l.b16 %v2007
    %v2136 = vunpack.c.l.b16 %v2008
    %v2137 = vunpack.c.l.b16 %v2009
    %v2138 = vunpack.c.l.b16 %v2010
    %v2139 = vunpack.c.l.b16 %v2011
    %v2140 = vunpack.c.l.b16 %v2012
    %v2141 = vunpack.c.l.b16 %v2013
    %v2142 = vunpack.c.l.b16 %v2014
    %v2143 = vunpack.c.l.b16 %v2015
    %v2144 = vunpack.c.l.b16 %v2016
    %v2145 = vunpack.c.l.b16 %v2017
    %v2146 = vunpack.c.l.b16 %v2018
    %v2147 = vunpack.c.l.b16 %v2019
    %v2148 = vunpack.c.l.b16 %v2020
    %v2149 = vunpack.c.l.b16 %v2021
    %v2150 = vunpack.c.l.b16 %v2022
    %v2151 = vunpack.c.l.b16 %v2023
    %v2152 = vunpack.c.l.b16 %v2024
    %v2153 = vunpack.c.l.b16 %v2025
    %v2154 = vunpack.c.l.b16 %v2026
    %v2155 = vunpack.c.l.b16 %v2027
    %v2156 = vunpack.c.l.b16 %v2028
    %v2157 = vunpack.c.l.b16 %v2029
    %v2158 = vunpack.c.l.b16 %v2030
    %v2159 = vunpack.c.l.b16 %v2031
    %v2160 = vunpack.c.l.b16 %v2032
    %v2161 = vunpack.c.l.b16 %v2033
    %v2162 = vunpack.c.l.b16 %v2034
    %v2163 = vunpack.c.l.b16 %v2035
    %v2164 = vunpack.c.l.b16 %v2036
    %v2165 = vunpack.c.l.b16 %v2037
    %v2166 = vunpack.c.l.b16 %v2038
    %v2167 = vunpack.c.l.b16 %v2039
    %v2168 = vunpack.c.l.b16 %v2040
    %v2169 = vunpack.c.l.b16 %v2041
    %v2170 = vunpack.c.l.b16 %v2042
    %v2171 = vunpack.c.l.b16 %v2043
    %v2172 = vunpack.c.l.b16 %v2044
    %v2173 = vunpack.c.l.b16 %v2045
    %v2174 = vunpack.c.l.b16 %v2046
    %v2175 = vunpack.c.l.b16 %v2047
    %v2176 = vunpack.c.l.b16 %v2048
    %v2177 = vunpack.c.l.b16 %v2049
    %v2178 = vunpack.c.l.b16 %v2050
    %v2179 = vunpack.c.l.b16 %v2051
    %v2180 = vunpack.c.l.b16 %v2052
    %v2181 = vunpack.c.l.b16 %v2053
    %v2182 = vunpack.c.l.b16 %v2054
    %v2183 = vunpack.c.l.b16 %v2055
    %v2184 = vunpack.c.l.b16 %v2056
    %v2185 = vunpack.c.l.b16 %v2057
    %v2186 = vunpack.c.l.b16 %v2058
    %v2187 = vunpack.c.l.b16 %v2059
    %v2188 = vunpack.c.l.b16 %v2060
    %v2189 = vunpack.c.l.b16 %v2061
    %v2190 = vunpack.c.l.b16 %v2062
    %v2191 = vunpack.c.l.b16 %v2063
    %v2192 = vunpack.c.l.b16 %v2064
    %v2193 = vunpack.c.l.b16 %v2065
    %v2194 = vunpack.c.l.b16 %v2066
    %v2195 = vunpack.c.l.b16 %v2067
    %v2196 = vpack.c.b16 %v2133, %v2132
    %v2197 = vpack.c.b16 %v2135, %v2134
    %v2198 = vpack.c.b16 %v2137, %v2136
    %v2199 = vpack.c.b16 %v2139, %v2138
    %v2200 = vpack.c.b16 %v2141, %v2140
    %v2201 = vpack.c.b16 %v2143, %v2142
    %v2202 = vpack.c.b16 %v2145, %v2144
    %v2203 = vpack.c.b16 %v2147, %v2146
    %v2204 = vpack.c.b16 %v2149, %v2148
    %v2205 = vpack.c.b16 %v2151, %v2150
    %v2206 = vpack.c.b16 %v2153, %v2152
    %v2207 = vpack.c.b16 %v2155, %v2154
    %v2208 = vpack.c.b16 %v2157, %v2156
    %v2209 = vpack.c.b16 %v2159, %v2158
    %v2210 = vpack.c.b16 %v2161, %v2160
    %v2211 = vpack.c.b16 %v2163, %v2162
    %v2212 = vpack.c.b16 %v2165, %v2164
    %v2213 = vpack.c.b16 %v2167, %v2166
    %v2214 = vpack.c.b16 %v2169, %v2168
    %v2215 = vpack.c.b16 %v2171, %v2170
    %v2216 = vpack.c.b16 %v2173, %v2172
    %v2217 = vpack.c.b16 %v2175, %v2174
    %v2218 = vpack.c.b16 %v2177, %v2176
    %v2219 = vpack.c.b16 %v2179, %v2178
    %v2220 = vpack.c.b16 %v2181, %v2180
    %v2221 = vpack.c.b16 %v2183, %v2182
    %v2222 = vpack.c.b16 %v2185, %v2184
    %v2223 = vpack.c.b16 %v2187, %v2186
    %v2224 = vpack.c.b16 %v2189, %v2188
    %v2225 = vpack.c.b16 %v2191, %v2190
    %v2226 = vpack.c.b16 %v2193, %v2192
    %v2227 = vpack.c.b16 %v2195, %v2194
    %2260 = vmatprep.subr.bf16.mxu0 0
    %2261 = vmatpush1.bf16.msra.mxu0 %v2196
    %2262 = vmatprep.subr.bf16.mxu0 0
    %2263 = vmatpush1.bf16.msra.mxu0 %v2197
    %2264 = vmatprep.subr.bf16.mxu0 0
    %2265 = vmatpush1.bf16.msra.mxu0 %v2198
    %2266 = vmatprep.subr.bf16.mxu0 0
    %2267 = vmatpush1.bf16.msra.mxu0 %v2199
    %2268 = vmatprep.subr.bf16.mxu0 0
    %2269 = vmatpush1.bf16.msra.mxu0 %v2200
    %2270 = vmatprep.subr.bf16.mxu0 0
    %2271 = vmatpush1.bf16.msra.mxu0 %v2201
    %2272 = vmatprep.subr.bf16.mxu0 0
    %2273 = vmatpush1.bf16.msra.mxu0 %v2202
    %2274 = vmatprep.subr.bf16.mxu0 0
    %2275 = vmatpush1.bf16.msra.mxu0 %v2203
    %2276 = vmatprep.subr.bf16.mxu0 0
    %2277 = vmatpush1.bf16.msra.mxu0 %v2204
    %2278 = vmatprep.subr.bf16.mxu0 0
    %2279 = vmatpush1.bf16.msra.mxu0 %v2205
    %2280 = vmatprep.subr.bf16.mxu0 0
    %2281 = vmatpush1.bf16.msra.mxu0 %v2206
    %2282 = vmatprep.subr.bf16.mxu0 0
    %2283 = vmatpush1.bf16.msra.mxu0 %v2207
    %2284 = vmatprep.subr.bf16.mxu0 0
    %2285 = vmatpush1.bf16.msra.mxu0 %v2208
    %2286 = vmatprep.subr.bf16.mxu0 0
    %2287 = vmatpush1.bf16.msra.mxu0 %v2209
    %2288 = vmatprep.subr.bf16.mxu0 0
    %2289 = vmatpush1.bf16.msra.mxu0 %v2210
    %2290 = vmatprep.subr.bf16.mxu0 0
    %2291 = vmatpush1.bf16.msra.mxu0 %v2211
    %2292 = vmatprep.mubr.bf16.mxu0 %v2001
    %2293 = vmatmul.mubr.bf16.gmra.mrb[0].mxu0 %v2000
    %v2294 = vpop.f32.mrb[0].mxu0
    %v2295 = vadd.f32 %v59, %v2294
    %v2296 = vpop.f32.mrb[0].mxu0
    %v2297 = vpop.f32.mrb[0].mxu0
    %v2298 = vpop.f32.mrb[0].mxu0
    %2299 = vdwg.mxu0
    %2300 = vmatprep.subr.bf16.mxu0 0
    %2301 = vmatpush1.bf16.msra.mxu0 %v2212
    %2302 = vmatprep.subr.bf16.mxu0 0
    %2303 = vmatpush1.bf16.msra.mxu0 %v2213
    %2304 = vmatprep.subr.bf16.mxu0 0
    %2305 = vmatpush1.bf16.msra.mxu0 %v2214
    %2306 = vmatprep.subr.bf16.mxu0 0
    %2307 = vmatpush1.bf16.msra.mxu0 %v2215
    %2308 = vmatprep.subr.bf16.mxu0 0
    %2309 = vmatpush1.bf16.msra.mxu0 %v2216
    %2310 = vmatprep.subr.bf16.mxu0 0
    %2311 = vmatpush1.bf16.msra.mxu0 %v2217
    %2312 = vmatprep.subr.bf16.mxu0 0
    %2313 = vmatpush1.bf16.msra.mxu0 %v2218
    %2314 = vmatprep.subr.bf16.mxu0 0
    %2315 = vmatpush1.bf16.msra.mxu0 %v2219
    %2316 = vmatprep.subr.bf16.mxu0 0
    %2317 = vmatpush1.bf16.msra.mxu0 %v2220
    %2318 = vmatprep.subr.bf16.mxu0 0
    %2319 = vmatpush1.bf16.msra.mxu0 %v2221
    %2320 = vmatprep.subr.bf16.mxu0 0
    %2321 = vmatpush1.bf16.msra.mxu0 %v2222
    %2322 = vmatprep.subr.bf16.mxu0 0
    %2323 = vmatpush1.bf16.msra.mxu0 %v2223
    %2324 = vmatprep.subr.bf16.mxu0 0
    %2325 = vmatpush1.bf16.msra.mxu0 %v2224
    %2326 = vmatprep.subr.bf16.mxu0 0
    %2327 = vmatpush1.bf16.msra.mxu0 %v2225
    %2328 = vmatprep.subr.bf16.mxu0 0
    %2329 = vmatpush1.bf16.msra.mxu0 %v2226
    %2330 = vmatprep.subr.bf16.mxu0 0
    %2331 = vmatpush1.bf16.msra.mxu0 %v2227
    %2332 = vmatprep.mubr.bf16.mxu0 %v2003
    %2333 = vmatmul.mubr.bf16.gmra.mrb[0].mxu0 %v2002
    %v2334 = vpop.f32.mrb[0].mxu0
    %v2335 = vadd.f32 %v2295, %v2334
    %v2336 = vpop.f32.mrb[0].mxu0
    %v2337 = vpop.f32.mrb[0].mxu0
    %v2338 = vpop.f32.mrb[0].mxu0
    %2339 = vdwg.mxu0
    %v2340 = vmax.f32 %v2335, 0.0
    %v2341 = vpack.c.bf16 %v2340, %v2340
    %v2342 = vld [vmem:[#allocation7 + $0x100] sm:$0xf]
    %v2343 = vld [vmem:[#allocation7 + $0x104] sm:$0xf]
    %v2344 = vld [vmem:[#allocation7 + $0x108] sm:$0xf]
    %v2345 = vld [vmem:[#allocation7 + $0x10c] sm:$0xf]
    %v2346 = vld [vmem:[#allocation7 + $0x110] sm:$0xf]
    %v2347 = vld [vmem:[#allocation7 + $0x114] sm:$0xf]
    %v2348 = vld [vmem:[#allocation7 + $0x118] sm:$0xf]
    %v2349 = vld [vmem:[#allocation7 + $0x11c] sm:$0xf]
    %v2350 = vld [vmem:[#allocation7 + $0x120] sm:$0xf]
    %v2351 = vld [vmem:[#allocation7 + $0x124] sm:$0xf]
    %v2352 = vld [vmem:[#allocation7 + $0x128] sm:$0xf]
    %v2353 = vld [vmem:[#allocation7 + $0x12c] sm:$0xf]
    %v2354 = vld [vmem:[#allocation7 + $0x130] sm:$0xf]
    %v2355 = vld [vmem:[#allocation7 + $0x134] sm:$0xf]
    %v2356 = vld [vmem:[#allocation7 + $0x138] sm:$0xf]
    %v2357 = vld [vmem:[#allocation7 + $0x13c] sm:$0xf]
    %v2374 = vunpack.c.l.b16 %v2342
    %v2375 = vunpack.c.l.b16 %v2343
    %v2376 = vunpack.c.l.b16 %v2344
    %v2377 = vunpack.c.l.b16 %v2345
    %v2378 = vunpack.c.l.b16 %v2346
    %v2379 = vunpack.c.l.b16 %v2347
    %v2380 = vunpack.c.l.b16 %v2348
    %v2381 = vunpack.c.l.b16 %v2349
    %v2382 = vunpack.c.l.b16 %v2350
    %v2383 = vunpack.c.l.b16 %v2351
    %v2384 = vunpack.c.l.b16 %v2352
    %v2385 = vunpack.c.l.b16 %v2353
    %v2386 = vunpack.c.l.b16 %v2354
    %v2387 = vunpack.c.l.b16 %v2355
    %v2388 = vunpack.c.l.b16 %v2356
    %v2389 = vunpack.c.l.b16 %v2357
    %v2390 = vpack.c.b16 %v2375, %v2374
    %v2391 = vpack.c.b16 %v2377, %v2376
    %v2392 = vpack.c.b16 %v2379, %v2378
    %v2393 = vpack.c.b16 %v2381, %v2380
    %v2394 = vpack.c.b16 %v2383, %v2382
    %v2395 = vpack.c.b16 %v2385, %v2384
    %v2396 = vpack.c.b16 %v2387, %v2386
    %v2397 = vpack.c.b16 %v2389, %v2388
    %2406 = vmatprep.subr.bf16.mxu0 0
    %2407 = vmatpush1.bf16.msra.mxu0 %v2390
    %2408 = vmatprep.subr.bf16.mxu0 0
    %2409 = vmatpush1.bf16.msra.mxu0 %v2391
    %2410 = vmatprep.subr.bf16.mxu0 0
    %2411 = vmatpush1.bf16.msra.mxu0 %v2392
    %2412 = vmatprep.subr.bf16.mxu0 0
    %2413 = vmatpush1.bf16.msra.mxu0 %v2393
    %2414 = vmatprep.subr.bf16.mxu0 0
    %2415 = vmatpush1.bf16.msra.mxu0 %v2394
    %2416 = vmatprep.subr.bf16.mxu0 0
    %2417 = vmatpush1.bf16.msra.mxu0 %v2395
    %2418 = vmatprep.subr.bf16.mxu0 0
    %2419 = vmatpush1.bf16.msra.mxu0 %v2396
    %2420 = vmatprep.subr.bf16.mxu0 0
    %2421 = vmatpush1.bf16.msra.mxu0 %v2397
    %2422 = vmatprep.subr.bf16.mxu0 0
    %2423 = vmatpush1.bf16.msra.mxu0 0
    %2424 = vmatprep.subr.bf16.mxu0 0
    %2425 = vmatpush1.bf16.msra.mxu0 0
    %2426 = vmatprep.subr.bf16.mxu0 0
    %2427 = vmatpush1.bf16.msra.mxu0 0
    %2428 = vmatprep.subr.bf16.mxu0 0
    %2429 = vmatpush1.bf16.msra.mxu0 0
    %2430 = vmatprep.subr.bf16.mxu0 0
    %2431 = vmatpush1.bf16.msra.mxu0 0
    %2432 = vmatprep.subr.bf16.mxu0 0
    %2433 = vmatpush1.bf16.msra.mxu0 0
    %2434 = vmatprep.subr.bf16.mxu0 0
    %2435 = vmatpush1.bf16.msra.mxu0 0
    %2436 = vmatprep.subr.bf16.mxu0 0
    %2437 = vmatpush1.bf16.msra.mxu0 0
    %2438 = vmatprep.mubr.bf16.mxu0 0
    %2439 = vmatmul.mubr.bf16.gmra.mrb[0].mxu0 %v2341
    %v2440 = vpop.f32.mrb[0].mxu0
    %v2441 = vadd.f32 %v60, %v2440
    %v2442 = vpop.f32.mrb[0].mxu0
    %v2443 = vpop.f32.mrb[0].mxu0
    %v2444 = vpop.f32.mrb[0].mxu0
    %2445 = vdwg.mxu0
    %2446 = vst [vmem:[#allocation8] sm:$0x1] %v2441
    // Predicated region
    $region30: #{linear_evo_actor_forward.1} parent=1 // pred_check
      _
    $region31: #{linear_evo_actor_forward.1} parent=1 // pred_check_branch
      %2448 = sbr.rel (0) target = $region33
    $region32: #{linear_evo_actor_forward.1} parent=1 // pred_region
      %s2450 = ssub.s32 16, 16
      %2451 = vsyncadd [#allocation4], %s2450
      %s2453 = sshll.u32 [#allocation8], 4
      %s2454 = int_to_ptr.vmem [resolvable:$true] %s2453
      %2456 = dma.vmem_to_hbm [thread:$0]  %s2454, 16, %s4, [#allocation4]
    $region33: #{linear_evo_actor_forward.1} parent=1 // pred_fallthru
      _
    // Predicated region
    $region34: #{linear_evo_actor_forward.1} parent=1 // pred_check
      _
    $region35: #{linear_evo_actor_forward.1} parent=1 // pred_check_branch
      %2458 = sbr.rel (0) target = $region37
    $region36: #{linear_evo_actor_forward.1} parent=1 // pred_region
      %2459 = dma.done [#allocation4], 16
    $region37: #{linear_evo_actor_forward.1} parent=1 // pred_fallthru
      _
    %2460 = vsyncpa [#allocation3], 1
    %2461 = vsyncpa [#allocation6], 1
    %2462 = vsyncpa [#allocation4], 1

</llo_original>
